<compile_context>
chip_gen: v5e
topology: v5e:2x2
jax: 0.10.0
libtpu: 0.0.40
codegen_flags: <defaults>
</compile_context>

<pallas_src>
import math
import functools

import jax
import jax.numpy as jnp
import numpy as np
from jax.experimental import pallas as pl
from jax.experimental.pallas import tpu as pltpu

LN_EPS = 1e-5          # nn.LayerNorm default inside TransformerEncoderLayer
NEG_INF = -1e30


def _layer_norm(x, w, b):
    mu = jnp.mean(x, axis=-1, keepdims=True)
    var = jnp.mean((x - mu) ** 2, axis=-1, keepdims=True)
    return (x - mu) * jax.lax.rsqrt(var + LN_EPS) * w + b


# --------------------------------------------------------------------------
# Pallas kernel: one grid step = one (batch-tile, layer) pair.
# --------------------------------------------------------------------------
def _make_kernel(num_layers: int, num_heads: int, bt: int, seq: int,
                 emb: int, dh: int, cpad: int):
    M = bt * seq  # matmul M dimension (batch folded in for the projections)

    def kernel(x_ref, pe_ref,
               wqkv_ref, bqkv_ref, wo_ref, bo_ref,
               w1_ref, b1_ref, w2_ref, b2_ref,
               ln1w_ref, ln1b_ref, ln2w_ref, ln2b_ref,
               wout_ref, bout_ref,
               out_ref, x_s, attn_s):
        l = pl.program_id(1)

        # ---- first layer: load batch tile, add PE, flatten to (M, E) slab ---
        @pl.when(l == 0)
        def _():
            h0 = x_ref[...] + pe_ref[...][None]          # (Bt, S, E) f32
            x_s[...] = h0.reshape(M, emb)

        x = x_s[...]                                     # (M, E) f32 carried act
        xb = x.astype(jnp.bfloat16)

        # ---- self-attention block (post-norm) --------------------------------
        # fused QKV projection on the flat slab; 1/sqrt(Dh) already folded into
        # the Q weights/bias in the wrapper.
        qkv = jnp.dot(xb, wqkv_ref[0],
                      preferred_element_type=jnp.float32) + bqkv_ref[0]
        qkv3 = qkv.reshape(bt, seq, 3 * emb)             # (Bt, S, 3E)

        # in-kernel causal mask: two iota compares, (S, S), shared by all
        # heads / batch elements (no (M,M) HBM constant, no VALU add).
        q_idx = jax.lax.broadcasted_iota(jnp.int32, (seq, seq), 0)
        k_idx = jax.lax.broadcasted_iota(jnp.int32, (seq, seq), 1)
        causal = (k_idx <= q_idx)[None]                  # (1, S, S) bool

        # per-head attention, batched over the Bt batch elements; head outputs
        # are written at their lane offset into attn_s, so the output
        # projection is ONE K=E matmul instead of H K=Dh matmuls.
        for h in range(num_heads):
            qh = qkv3[:, :, h * dh:(h + 1) * dh].astype(jnp.bfloat16)
            kh = qkv3[:, :, emb + h * dh: emb + (h + 1) * dh].astype(jnp.bfloat16)
            vh = qkv3[:, :, 2 * emb + h * dh: 2 * emb + (h + 1) * dh].astype(jnp.bfloat16)
            s = jnp.einsum('bqd,bkd->bqk', qh, kh,
                           preferred_element_type=jnp.float32)      # (Bt, S, S)
            s = jnp.where(causal, s, NEG_INF)
            m = jnp.max(s, axis=-1, keepdims=True)
            p = jnp.exp(s - m)
            p = p * pl.reciprocal(jnp.sum(p, axis=-1, keepdims=True), approx=True)
            o = jnp.einsum('bqk,bkd->bqd', p.astype(jnp.bfloat16), vh,
                           preferred_element_type=jnp.float32)      # (Bt, S, Dh)
            attn_s[:, h * dh:(h + 1) * dh] = o.reshape(M, dh).astype(jnp.bfloat16)

        attn = jnp.dot(attn_s[...], wo_ref[0],
                       preferred_element_type=jnp.float32) + bo_ref[0]
        x = _layer_norm(x + attn, ln1w_ref[0], ln1b_ref[0])

        # ---- feed-forward block ----------------------------------------------
        hdn = jnp.dot(x.astype(jnp.bfloat16), w1_ref[0],
                      preferred_element_type=jnp.float32) + b1_ref[0]
        hdn = jnp.maximum(hdn, 0.0)                      # relu
        ff = jnp.dot(hdn.astype(jnp.bfloat16), w2_ref[0],
                     preferred_element_type=jnp.float32) + b2_ref[0]
        x = _layer_norm(x + ff, ln2w_ref[0], ln2b_ref[0])

        x_s[...] = x

        # ---- last layer: output linear (lane-dense, padded) + log-softmax ----
        @pl.when(l == num_layers - 1)
        def _():
            logits = jnp.dot(x.astype(jnp.bfloat16), wout_ref[...],
                             preferred_element_type=jnp.float32) + bout_ref[...]
            mx = jnp.max(logits, axis=-1, keepdims=True)
            lse = mx + jnp.log(jnp.sum(jnp.exp(logits - mx), axis=-1,
                                       keepdims=True))
            out_ref[...] = (logits - lse).reshape(bt, seq, cpad)

    return kernel


# --------------------------------------------------------------------------
# Wrapper
# --------------------------------------------------------------------------
def sincos_pos_encoding(seq_len: int, d_model: int) -> jnp.ndarray:
    position = jnp.arange(seq_len, dtype=jnp.float32)[:, None]
    div_term = jnp.exp(jnp.arange(0, d_model, 2, dtype=jnp.float32)
                       * (-math.log(10000.0) / d_model))
    pe = jnp.zeros((seq_len, d_model), jnp.float32)
    pe = pe.at[:, 0::2].set(jnp.sin(position * div_term))
    pe = pe.at[:, 1::2].set(jnp.cos(position * div_term))
    return pe


def _pick_batch_tile(B: int, S: int, *, target_m: int = 512,
                     min_tiles: int = 2) -> int:
    # Largest divisor bt of B with bt*S <= target_m, keeping at least
    # `min_tiles` batch tiles so the 'parallel' grid axis can be sharded
    # across v7x's 2 TensorCores (extra tiles are a cheap sequential loop on
    # single-core v5e/v6e).
    best = 1
    for d in range(1, B + 1):
        if B % d:
            continue
        if d * S > max(S, target_m):
            continue
        if d != 1 and (B // d) < min_tiles:
            continue
        best = d
    return best


@functools.partial(jax.jit,
                   static_argnames=("num_heads", "num_layers", "batch_tile"))
def self_mha_decoder_forward(x, params, *, num_heads: int, num_layers: int,
                             batch_tile=None):
    B, S, E = x.shape
    L = num_layers
    H = num_heads
    Dh = E // H
    C = params["wout"].shape[0]
    F = params["w1"].shape[1]
    Cpad = ((C + 127) // 128) * 128

    bt = batch_tile if batch_tile is not None else _pick_batch_tile(B, S)
    assert B % bt == 0, "batch tile must divide batch"
    M = bt * S

    f32, bf16 = jnp.float32, jnp.bfloat16
    scale = 1.0 / math.sqrt(Dh)

    # Fold 1/sqrt(Dh) into Q projection; pre-transpose for x @ W layouts; cast
    # matmul weights to bf16 (accumulation stays f32 inside the kernel).
    wqkv = params["wqkv"].astype(f32).at[:, :E, :].multiply(scale)
    bqkv = params["bqkv"].astype(f32).at[:, :E].multiply(scale)
    wqkv_t = jnp.transpose(wqkv, (0, 2, 1)).astype(bf16)            # (L, E, 3E)
    bqkv_r = bqkv.reshape(L, 1, 3 * E)

    wo_t = jnp.transpose(params["wo"], (0, 2, 1)).astype(bf16)      # (L, E, E)
    bo_r = params["bo"].reshape(L, 1, E).astype(f32)

    w1_t = jnp.transpose(params["w1"], (0, 2, 1)).astype(bf16)      # (L, E, F)
    b1_r = params["b1"].reshape(L, 1, F).astype(f32)
    w2_t = jnp.transpose(params["w2"], (0, 2, 1)).astype(bf16)      # (L, F, E)
    b2_r = params["b2"].reshape(L, 1, E).astype(f32)

    ln1w = params["ln1w"].reshape(L, 1, E).astype(f32)
    ln1b = params["ln1b"].reshape(L, 1, E).astype(f32)
    ln2w = params["ln2w"].reshape(L, 1, E).astype(f32)
    ln2b = params["ln2b"].reshape(L, 1, E).astype(f32)

    # Lane-dense output head (padded to a multiple of 128 classes); padded
    # classes get bias -1e30 so the log-softmax normalizer ignores them.
    wout_pad = jnp.zeros((E, Cpad), f32).at[:, :C].set(
        params["wout"].T.astype(f32)).astype(bf16)
    bout_pad = jnp.full((1, Cpad), NEG_INF, f32).at[:, :C].set(
        params["bout"].reshape(1, C).astype(f32))

    pe = sincos_pos_encoding(S, E)                                  # (S, E)

    # ---- BlockSpecs ------------------------------------------------------
    def layer_spec(*dims):
        zeros = (0,) * len(dims)
        return pl.BlockSpec((1,) + tuple(dims), lambda b, l: (l,) + zeros)

    in_specs = [
        pl.BlockSpec((bt, S, E), lambda b, l: (b, 0, 0)),   # x (one batch tile)
        pl.BlockSpec((S, E), lambda b, l: (0, 0)),          # pe        (const)
        layer_spec(E, 3 * E), layer_spec(1, 3 * E),         # qkv proj
        layer_spec(E, E), layer_spec(1, E),                 # attn out proj
        layer_spec(E, F), layer_spec(1, F),                 # ffn linear1
        layer_spec(F, E), layer_spec(1, E),                 # ffn linear2
        layer_spec(1, E), layer_spec(1, E),                 # layernorm1 w/b
        layer_spec(1, E), layer_spec(1, E),                 # layernorm2 w/b
        pl.BlockSpec((E, Cpad), lambda b, l: (0, 0)),       # out_linear W (const)
        pl.BlockSpec((1, Cpad), lambda b, l: (0, 0)),       # out_linear b (const)
    ]

    # ---- VMEM budget: generation-aware (v7x 64 MiB vs v5e/v6e 128 MiB) ----
    vmem_cap = 64 * 1024 * 1024
    try:
        vmem_cap = int(getattr(pltpu.get_tpu_info(), "vmem_capacity_bytes",
                               vmem_cap))
    except Exception:
        pass
    per_layer_w = (E * 3 * E + E * E + E * F + F * E) * 2          # bf16
    per_layer_v = (3 * E + E + F + E + 4 * E) * 4                  # f32
    const_b = S * E * 4 + E * Cpad * 2 + Cpad * 4
    io_b = 2 * (bt * S * E * 4) + 2 * (bt * S * Cpad * 4)
    scratch_b = M * E * 4 + M * E * 2
    tmp_b = (M * 3 * E + M * F + M * Cpad + 2 * M * E) * 4 + 2 * bt * S * S * 4
    est = 2 * (per_layer_w + per_layer_v) + 2 * const_b + io_b + scratch_b + tmp_b
    vmem_limit = int(min(int(0.75 * vmem_cap),
                         max(16 * 1024 * 1024, 2 * est)))

    kernel = _make_kernel(num_layers, num_heads, bt, S, E, Dh, Cpad)

    # NOTE: the carried-activation scratch x_s relies on the layer axis being
    # the innermost, sequentially executed ("arbitrary") grid axis.  Do not
    # reorder the grid or change its dimension_semantics.
    out_pad = pl.pallas_call(
        kernel,
        out_shape=jax.ShapeDtypeStruct((B, S, Cpad), jnp.float32),
        grid=(B // bt, L),
        in_specs=in_specs,
        out_specs=pl.BlockSpec((bt, S, Cpad), lambda b, l: (b, 0, 0)),
        scratch_shapes=[pltpu.VMEM((M, E), jnp.float32),    # carried activations
                        pltpu.VMEM((M, E), jnp.bfloat16)],  # per-head attn concat
        compiler_params=pltpu.CompilerParams(
            dimension_semantics=("parallel", "arbitrary"),
            vmem_limit_bytes=vmem_limit),
    )(x, pe, wqkv_t, bqkv_r, wo_t, bo_r,
      w1_t, b1_r, w2_t, b2_r, ln1w, ln1b, ln2w, ln2b, wout_pad, bout_pad)

    return out_pad[:, :, :C]


# --------------------------------------------------------------------------
# Deterministic parameter init (mirrors uniform(-stdv, stdv) reset_parameters)
# --------------------------------------------------------------------------
def init_params(key, emb_dim, num_layers, num_classes):
    E = emb_dim
    F = emb_dim  # dim_feedforward == emb_dim in the module

    def uni(k, shape):
        stdv = 1.0 / math.sqrt(shape[-1])
        return jax.random.uniform(k, shape, jnp.float32, -stdv, stdv)

    keys = iter(jax.random.split(key, 20))
    return dict(
        wqkv=uni(next(keys), (num_layers, 3 * E, E)),
        bqkv=uni(next(keys), (num_layers, 3 * E)),
        wo=uni(next(keys), (num_layers, E, E)),
        bo=uni(next(keys), (num_layers, E)),
        w1=uni(next(keys), (num_layers, F, E)),
        b1=uni(next(keys), (num_layers, F)),
        w2=uni(next(keys), (num_layers, E, F)),
        b2=uni(next(keys), (num_layers, E)),
        ln1w=uni(next(keys), (num_layers, E)),
        ln1b=uni(next(keys), (num_layers, E)),
        ln2w=uni(next(keys), (num_layers, E)),
        ln2b=uni(next(keys), (num_layers, E)),
        wout=uni(next(keys), (num_classes, E)),
        bout=uni(next(keys), (1, num_classes)),
    )


# --------------------------------------------------------------------------
# Pure-JAX f32 reference (module semantics) for correctness checking
# --------------------------------------------------------------------------
def reference_forward(x, params, *, num_heads, num_layers):
    B, S, E = x.shape
    Dh = E // num_heads
    h = x + sincos_pos_encoding(S, E)[None]
    mask = jnp.where(jnp.arange(S)[None, :] > jnp.arange(S)[:, None], NEG_INF, 0.0)
    for l in range(num_layers):
        qkv = h @ params["wqkv"][l].T + params["bqkv"][l]
        q, k, v = qkv[..., :E], qkv[..., E:2 * E], qkv[..., 2 * E:]
        q = q.reshape(B, S, num_heads, Dh).transpose(0, 2, 1, 3)
        k = k.reshape(B, S, num_heads, Dh).transpose(0, 2, 1, 3)
        v = v.reshape(B, S, num_heads, Dh).transpose(0, 2, 1, 3)
        s = jnp.einsum("bhqd,bhkd->bhqk", q, k) / math.sqrt(Dh) + mask
        p = jax.nn.softmax(s, axis=-1)
        a = jnp.einsum("bhqk,bhkd->bhqd", p, v).transpose(0, 2, 1, 3).reshape(B, S, E)
        a = a @ params["wo"][l].T + params["bo"][l]
        h = _layer_norm(h + a, params["ln1w"][l], params["ln1b"][l])
        ff = jax.nn.relu(h @ params["w1"][l].T + params["b1"][l]) \
             @ params["w2"][l].T + params["b2"][l]
        h = _layer_norm(h + ff, params["ln2w"][l], params["ln2b"][l])
    logits = h @ params["wout"].T + params["bout"][0]
    return jax.nn.log_softmax(logits, axis=-1)


if __name__ == "__main__":
    # Small shapes consistent with the module's forward: (B, S, E) -> (B, S, C)
    B, S, E = 2, 8, 32
    NUM_HEADS, NUM_LAYERS, NUM_CLASSES = 4, 2, 8

    key = jax.random.PRNGKey(0)
    kx, kp = jax.random.split(key)
    edge_emb = jax.random.normal(kx, (B, S, E), jnp.float32)
    params = init_params(kp, E, NUM_LAYERS, NUM_CLASSES)

    out = self_mha_decoder_forward(edge_emb, params,
                                   num_heads=NUM_HEADS, num_layers=NUM_LAYERS)
    out = jax.block_until_ready(out)
    assert out.shape == (B, S, NUM_CLASSES)

    ref = reference_forward(edge_emb, params,
                            num_heads=NUM_HEADS, num_layers=NUM_LAYERS)
    # bf16 matmuls + approx reciprocal vs f32 reference -> relaxed tolerance
    np.testing.assert_allclose(np.asarray(out), np.asarray(ref),
                               rtol=0.0, atol=2e-2)

    print("KERNEL_OK")
</pallas_src>

<mosaic_0001>
module attributes {stable_mosaic.version = 11 : i64} {
  func.func @kernel(%arg0: i32, %arg1: i32, %arg2: memref<1x8x32xf32, #tpu.memory_space<vmem>>, %arg3: memref<8x32xf32, #tpu.memory_space<vmem>>, %arg4: memref<1x32x96xbf16, #tpu.memory_space<vmem>>, %arg5: memref<1x1x96xf32, #tpu.memory_space<vmem>>, %arg6: memref<1x32x32xbf16, #tpu.memory_space<vmem>>, %arg7: memref<1x1x32xf32, #tpu.memory_space<vmem>>, %arg8: memref<1x32x32xbf16, #tpu.memory_space<vmem>>, %arg9: memref<1x1x32xf32, #tpu.memory_space<vmem>>, %arg10: memref<1x32x32xbf16, #tpu.memory_space<vmem>>, %arg11: memref<1x1x32xf32, #tpu.memory_space<vmem>>, %arg12: memref<1x1x32xf32, #tpu.memory_space<vmem>>, %arg13: memref<1x1x32xf32, #tpu.memory_space<vmem>>, %arg14: memref<1x1x32xf32, #tpu.memory_space<vmem>>, %arg15: memref<1x1x32xf32, #tpu.memory_space<vmem>>, %arg16: memref<32x128xbf16, #tpu.memory_space<vmem>>, %arg17: memref<1x128xf32, #tpu.memory_space<vmem>>, %arg18: memref<1x8x128xf32, #tpu.memory_space<vmem>>, %arg19: memref<8x32xf32, #tpu.memory_space<vmem>>, %arg20: memref<8x32xbf16, #tpu.memory_space<vmem>>) attributes {dimension_semantics = [#tpu.dimension_semantics<parallel>, #tpu.dimension_semantics<arbitrary>], iteration_bounds = array<i64: 2, 2>, scalar_prefetch = 0 : i64, scratch_operands = 2 : i64, tpu.core_type = #tpu.core_type<tc>, window_params = [{transform_indices = @transform_0, window_bounds = array<i64: 1, 8, 32>}, {pipeline_mode = #tpu.pipeline_mode<synchronous>, transform_indices = @transform_1, window_bounds = array<i64: 8, 32>}, {transform_indices = @transform_2, window_bounds = array<i64: 1, 32, 96>}, {transform_indices = @transform_3, window_bounds = array<i64: 1, 1, 96>}, {transform_indices = @transform_4, window_bounds = array<i64: 1, 32, 32>}, {transform_indices = @transform_5, window_bounds = array<i64: 1, 1, 32>}, {transform_indices = @transform_6, window_bounds = array<i64: 1, 32, 32>}, {transform_indices = @transform_7, window_bounds = array<i64: 1, 1, 32>}, {transform_indices = @transform_8, window_bounds = array<i64: 1, 32, 32>}, {transform_indices = @transform_9, window_bounds = array<i64: 1, 1, 32>}, {transform_indices = @transform_10, window_bounds = array<i64: 1, 1, 32>}, {transform_indices = @transform_11, window_bounds = array<i64: 1, 1, 32>}, {transform_indices = @transform_12, window_bounds = array<i64: 1, 1, 32>}, {transform_indices = @transform_13, window_bounds = array<i64: 1, 1, 32>}, {pipeline_mode = #tpu.pipeline_mode<synchronous>, transform_indices = @transform_14, window_bounds = array<i64: 32, 128>}, {pipeline_mode = #tpu.pipeline_mode<synchronous>, transform_indices = @transform_15, window_bounds = array<i64: 1, 128>}, {transform_indices = @transform_16, window_bounds = array<i64: 1, 8, 128>}]} {
    %c0_i32 = arith.constant 0 : i32
    %0 = arith.cmpi eq, %arg1, %c0_i32 : i32
    %1 = arith.extui %0 : i1 to i32
    %c0_i32_0 = arith.constant 0 : i32
    %2 = arith.cmpi ne, %1, %c0_i32_0 : i32
    scf.if %2 {
      %c0_82 = arith.constant 0 : index
      %c0_83 = arith.constant 0 : index
      %c0_84 = arith.constant 0 : index
      %197 = vector.load %arg2[%c0_82, %c0_83, %c0_84] : memref<1x8x32xf32, #tpu.memory_space<vmem>>, vector<1x8x32xf32>
      %c0_85 = arith.constant 0 : index
      %c0_86 = arith.constant 0 : index
      %198 = vector.load %arg3[%c0_85, %c0_86] : memref<8x32xf32, #tpu.memory_space<vmem>>, vector<8x32xf32>
      %199 = vector.shape_cast %198 : vector<8x32xf32> to vector<1x8x32xf32>
      %200 = arith.addf %197, %199 : vector<1x8x32xf32>
      %201 = vector.shape_cast %200 : vector<1x8x32xf32> to vector<8x32xf32>
      %c0_87 = arith.constant 0 : index
      %c0_88 = arith.constant 0 : index
      %202 = vector.load %arg19[%c0_87, %c0_88] : memref<8x32xf32, #tpu.memory_space<vmem>>, vector<8x32xf32>
      tpu.vector_store %arg19[%c0_87, %c0_88], %201 {strides = array<i32>} : memref<8x32xf32, #tpu.memory_space<vmem>>, vector<8x32xf32>,
    } else {
    }
    %c0 = arith.constant 0 : index
    %c0_1 = arith.constant 0 : index
    %3 = vector.load %arg19[%c0, %c0_1] : memref<8x32xf32, #tpu.memory_space<vmem>>, vector<8x32xf32>
    %4 = arith.truncf %3 : vector<8x32xf32> to vector<8x32xbf16>
    %c0_2 = arith.constant 0 : index
    %c0_3 = arith.constant 0 : index
    %c0_4 = arith.constant 0 : index
    %5 = vector.load %arg4[%c0_2, %c0_3, %c0_4] : memref<1x32x96xbf16, #tpu.memory_space<vmem>>, vector<1x32x96xbf16>
    %6 = vector.shape_cast %5 : vector<1x32x96xbf16> to vector<32x96xbf16>
    %cst = arith.constant dense<0.000000e+00> : vector<8x96xf32>
    %7 = tpu.matmul %4, %6, %cst {dimension_numbers = #tpu.dot_dimension_numbers<[1], [0], [0], [1], [0, 0, 1, 1], [], []>} : vector<8x32xbf16>, vector<32x96xbf16>, vector<8x96xf32> -> vector<8x96xf32>
    %c0_5 = arith.constant 0 : index
    %c0_6 = arith.constant 0 : index
    %c0_7 = arith.constant 0 : index
    %8 = vector.load %arg5[%c0_5, %c0_6, %c0_7] : memref<1x1x96xf32, #tpu.memory_space<vmem>>, vector<1x1x96xf32>
    %9 = vector.shape_cast %8 : vector<1x1x96xf32> to vector<1x96xf32>
    %10 = vector.broadcast %9 : vector<1x96xf32> to vector<8x96xf32>
    %11 = arith.addf %7, %10 : vector<8x96xf32>
    %12 = vector.shape_cast %11 : vector<8x96xf32> to vector<1x8x96xf32>
    %13 = tpu.iota {dimensions = array<i32: 0>} : vector<8x8xi32>
    %14 = tpu.iota {dimensions = array<i32: 1>} : vector<8x8xi32>
    %15 = arith.cmpi sle, %14, %13 : vector<8x8xi32>
    %16 = vector.shape_cast %15 : vector<8x8xi1> to vector<1x8x8xi1>
    %17 = vector.extract_strided_slice %12 {offsets = [0, 0, 0], sizes = [1, 8, 8], strides = [1, 1, 1]} : vector<1x8x96xf32> to vector<1x8x8xf32>
    %18 = arith.truncf %17 : vector<1x8x8xf32> to vector<1x8x8xbf16>
    %19 = vector.extract_strided_slice %12 {offsets = [0, 0, 32], sizes = [1, 8, 8], strides = [1, 1, 1]} : vector<1x8x96xf32> to vector<1x8x8xf32>
    %20 = arith.truncf %19 : vector<1x8x8xf32> to vector<1x8x8xbf16>
    %21 = vector.extract_strided_slice %12 {offsets = [0, 0, 64], sizes = [1, 8, 8], strides = [1, 1, 1]} : vector<1x8x96xf32> to vector<1x8x8xf32>
    %22 = arith.truncf %21 : vector<1x8x8xf32> to vector<1x8x8xbf16>
    "tpu.trace_start"() <{level = 10 : i32, message = "bqd,bkd->bqk"}> : () -> ()
    %cst_8 = arith.constant dense<0.000000e+00> : vector<1x8x8xf32>
    %23 = tpu.matmul %18, %20, %cst_8 {dimension_numbers = #tpu.dot_dimension_numbers<[2], [2], [1], [1], [0, 0, 0, 1, 1, 1], [0], [0]>} : vector<1x8x8xbf16>, vector<1x8x8xbf16>, vector<1x8x8xf32> -> vector<1x8x8xf32>
    %cst_9 = arith.constant -1.000000e+30 : f32
    "tpu.trace_stop"() : () -> ()
    %24 = vector.broadcast %cst_9 : f32 to vector<1x8x8xf32>
    %25 = arith.select %16, %23, %24 : vector<1x8x8xi1>, vector<1x8x8xf32>
    %cst_10 = arith.constant dense<0xFF800000> : vector<1x8xf32>
    %26 = vector.multi_reduction <maximumf>, %25, %cst_10 [2] : vector<1x8x8xf32> to vector<1x8xf32>
    %27 = vector.shape_cast %26 : vector<1x8xf32> to vector<1x8x1xf32>
    %28 = vector.broadcast %27 : vector<1x8x1xf32> to vector<1x8x8xf32>
    %29 = arith.subf %25, %28 : vector<1x8x8xf32>
    %30 = math.exp %29 : vector<1x8x8xf32>
    %cst_11 = arith.constant dense<0.000000e+00> : vector<1x8xf32>
    %31 = vector.multi_reduction <add>, %30, %cst_11 [2] : vector<1x8x8xf32> to vector<1x8xf32>
    %32 = vector.shape_cast %31 : vector<1x8xf32> to vector<1x8x1xf32>
    %33 = tpu.reciprocal %32 {approx = true} : vector<1x8x1xf32> -> vector<1x8x1xf32>
    %34 = vector.broadcast %33 : vector<1x8x1xf32> to vector<1x8x8xf32>
    %35 = arith.mulf %30, %34 : vector<1x8x8xf32>
    %36 = arith.truncf %35 : vector<1x8x8xf32> to vector<1x8x8xbf16>
    "tpu.trace_start"() <{level = 10 : i32, message = "bqk,bkd->bqd"}> : () -> ()
    %cst_12 = arith.constant dense<0.000000e+00> : vector<1x8x8xf32>
    %37 = tpu.matmul %36, %22, %cst_12 {dimension_numbers = #tpu.dot_dimension_numbers<[2], [1], [1], [2], [0, 0, 0, 1, 1, 2], [0], [0]>} : vector<1x8x8xbf16>, vector<1x8x8xbf16>, vector<1x8x8xf32> -> vector<1x8x8xf32>
    "tpu.trace_stop"() : () -> ()
    %38 = vector.shape_cast %37 : vector<1x8x8xf32> to vector<8x8xf32>
    %39 = arith.truncf %38 : vector<8x8xf32> to vector<8x8xbf16>
    %c0_13 = arith.constant 0 : index
    %c0_14 = arith.constant 0 : index
    %40 = vector.load %arg20[%c0_13, %c0_14] : memref<8x32xbf16, #tpu.memory_space<vmem>>, vector<8x8xbf16>
    tpu.vector_store %arg20[%c0_13, %c0_14], %39 {strides = array<i32>} : memref<8x32xbf16, #tpu.memory_space<vmem>>, vector<8x8xbf16>,
    %41 = vector.extract_strided_slice %12 {offsets = [0, 0, 8], sizes = [1, 8, 8], strides = [1, 1, 1]} : vector<1x8x96xf32> to vector<1x8x8xf32>
    %42 = arith.truncf %41 : vector<1x8x8xf32> to vector<1x8x8xbf16>
    %43 = vector.extract_strided_slice %12 {offsets = [0, 0, 40], sizes = [1, 8, 8], strides = [1, 1, 1]} : vector<1x8x96xf32> to vector<1x8x8xf32>
    %44 = arith.truncf %43 : vector<1x8x8xf32> to vector<1x8x8xbf16>
    %45 = vector.extract_strided_slice %12 {offsets = [0, 0, 72], sizes = [1, 8, 8], strides = [1, 1, 1]} : vector<1x8x96xf32> to vector<1x8x8xf32>
    %46 = arith.truncf %45 : vector<1x8x8xf32> to vector<1x8x8xbf16>
    "tpu.trace_start"() <{level = 10 : i32, message = "bqd,bkd->bqk"}> : () -> ()
    %cst_15 = arith.constant dense<0.000000e+00> : vector<1x8x8xf32>
    %47 = tpu.matmul %42, %44, %cst_15 {dimension_numbers = #tpu.dot_dimension_numbers<[2], [2], [1], [1], [0, 0, 0, 1, 1, 1], [0], [0]>} : vector<1x8x8xbf16>, vector<1x8x8xbf16>, vector<1x8x8xf32> -> vector<1x8x8xf32>
    %cst_16 = arith.constant -1.000000e+30 : f32
    "tpu.trace_stop"() : () -> ()
    %48 = vector.broadcast %cst_16 : f32 to vector<1x8x8xf32>
    %49 = arith.select %16, %47, %48 : vector<1x8x8xi1>, vector<1x8x8xf32>
    %cst_17 = arith.constant dense<0xFF800000> : vector<1x8xf32>
    %50 = vector.multi_reduction <maximumf>, %49, %cst_17 [2] : vector<1x8x8xf32> to vector<1x8xf32>
    %51 = vector.shape_cast %50 : vector<1x8xf32> to vector<1x8x1xf32>
    %52 = vector.broadcast %51 : vector<1x8x1xf32> to vector<1x8x8xf32>
    %53 = arith.subf %49, %52 : vector<1x8x8xf32>
    %54 = math.exp %53 : vector<1x8x8xf32>
    %cst_18 = arith.constant dense<0.000000e+00> : vector<1x8xf32>
    %55 = vector.multi_reduction <add>, %54, %cst_18 [2] : vector<1x8x8xf32> to vector<1x8xf32>
    %56 = vector.shape_cast %55 : vector<1x8xf32> to vector<1x8x1xf32>
    %57 = tpu.reciprocal %56 {approx = true} : vector<1x8x1xf32> -> vector<1x8x1xf32>
    %58 = vector.broadcast %57 : vector<1x8x1xf32> to vector<1x8x8xf32>
    %59 = arith.mulf %54, %58 : vector<1x8x8xf32>
    %60 = arith.truncf %59 : vector<1x8x8xf32> to vector<1x8x8xbf16>
    "tpu.trace_start"() <{level = 10 : i32, message = "bqk,bkd->bqd"}> : () -> ()
    %cst_19 = arith.constant dense<0.000000e+00> : vector<1x8x8xf32>
    %61 = tpu.matmul %60, %46, %cst_19 {dimension_numbers = #tpu.dot_dimension_numbers<[2], [1], [1], [2], [0, 0, 0, 1, 1, 2], [0], [0]>} : vector<1x8x8xbf16>, vector<1x8x8xbf16>, vector<1x8x8xf32> -> vector<1x8x8xf32>
    "tpu.trace_stop"() : () -> ()
    %62 = vector.shape_cast %61 : vector<1x8x8xf32> to vector<8x8xf32>
    %63 = arith.truncf %62 : vector<8x8xf32> to vector<8x8xbf16>
    %c0_20 = arith.constant 0 : index
    %c8 = arith.constant 8 : index
    %64 = vector.load %arg20[%c0_20, %c8] : memref<8x32xbf16, #tpu.memory_space<vmem>>, vector<8x8xbf16>
    tpu.vector_store %arg20[%c0_20, %c8], %63 {strides = array<i32>} : memref<8x32xbf16, #tpu.memory_space<vmem>>, vector<8x8xbf16>,
    %65 = vector.extract_strided_slice %12 {offsets = [0, 0, 16], sizes = [1, 8, 8], strides = [1, 1, 1]} : vector<1x8x96xf32> to vector<1x8x8xf32>
    %66 = arith.truncf %65 : vector<1x8x8xf32> to vector<1x8x8xbf16>
    %67 = vector.extract_strided_slice %12 {offsets = [0, 0, 48], sizes = [1, 8, 8], strides = [1, 1, 1]} : vector<1x8x96xf32> to vector<1x8x8xf32>
    %68 = arith.truncf %67 : vector<1x8x8xf32> to vector<1x8x8xbf16>
    %69 = vector.extract_strided_slice %12 {offsets = [0, 0, 80], sizes = [1, 8, 8], strides = [1, 1, 1]} : vector<1x8x96xf32> to vector<1x8x8xf32>
    %70 = arith.truncf %69 : vector<1x8x8xf32> to vector<1x8x8xbf16>
    "tpu.trace_start"() <{level = 10 : i32, message = "bqd,bkd->bqk"}> : () -> ()
    %cst_21 = arith.constant dense<0.000000e+00> : vector<1x8x8xf32>
    %71 = tpu.matmul %66, %68, %cst_21 {dimension_numbers = #tpu.dot_dimension_numbers<[2], [2], [1], [1], [0, 0, 0, 1, 1, 1], [0], [0]>} : vector<1x8x8xbf16>, vector<1x8x8xbf16>, vector<1x8x8xf32> -> vector<1x8x8xf32>
    %cst_22 = arith.constant -1.000000e+30 : f32
    "tpu.trace_stop"() : () -> ()
    %72 = vector.broadcast %cst_22 : f32 to vector<1x8x8xf32>
    %73 = arith.select %16, %71, %72 : vector<1x8x8xi1>, vector<1x8x8xf32>
    %cst_23 = arith.constant dense<0xFF800000> : vector<1x8xf32>
    %74 = vector.multi_reduction <maximumf>, %73, %cst_23 [2] : vector<1x8x8xf32> to vector<1x8xf32>
    %75 = vector.shape_cast %74 : vector<1x8xf32> to vector<1x8x1xf32>
    %76 = vector.broadcast %75 : vector<1x8x1xf32> to vector<1x8x8xf32>
    %77 = arith.subf %73, %76 : vector<1x8x8xf32>
    %78 = math.exp %77 : vector<1x8x8xf32>
    %cst_24 = arith.constant dense<0.000000e+00> : vector<1x8xf32>
    %79 = vector.multi_reduction <add>, %78, %cst_24 [2] : vector<1x8x8xf32> to vector<1x8xf32>
    %80 = vector.shape_cast %79 : vector<1x8xf32> to vector<1x8x1xf32>
    %81 = tpu.reciprocal %80 {approx = true} : vector<1x8x1xf32> -> vector<1x8x1xf32>
    %82 = vector.broadcast %81 : vector<1x8x1xf32> to vector<1x8x8xf32>
    %83 = arith.mulf %78, %82 : vector<1x8x8xf32>
    %84 = arith.truncf %83 : vector<1x8x8xf32> to vector<1x8x8xbf16>
    "tpu.trace_start"() <{level = 10 : i32, message = "bqk,bkd->bqd"}> : () -> ()
    %cst_25 = arith.constant dense<0.000000e+00> : vector<1x8x8xf32>
    %85 = tpu.matmul %84, %70, %cst_25 {dimension_numbers = #tpu.dot_dimension_numbers<[2], [1], [1], [2], [0, 0, 0, 1, 1, 2], [0], [0]>} : vector<1x8x8xbf16>, vector<1x8x8xbf16>, vector<1x8x8xf32> -> vector<1x8x8xf32>
    "tpu.trace_stop"() : () -> ()
    %86 = vector.shape_cast %85 : vector<1x8x8xf32> to vector<8x8xf32>
    %87 = arith.truncf %86 : vector<8x8xf32> to vector<8x8xbf16>
    %c0_26 = arith.constant 0 : index
    %c16 = arith.constant 16 : index
    %88 = vector.load %arg20[%c0_26, %c16] : memref<8x32xbf16, #tpu.memory_space<vmem>>, vector<8x8xbf16>
    tpu.vector_store %arg20[%c0_26, %c16], %87 {strides = array<i32>} : memref<8x32xbf16, #tpu.memory_space<vmem>>, vector<8x8xbf16>,
    %89 = vector.extract_strided_slice %12 {offsets = [0, 0, 24], sizes = [1, 8, 8], strides = [1, 1, 1]} : vector<1x8x96xf32> to vector<1x8x8xf32>
    %90 = arith.truncf %89 : vector<1x8x8xf32> to vector<1x8x8xbf16>
    %91 = vector.extract_strided_slice %12 {offsets = [0, 0, 56], sizes = [1, 8, 8], strides = [1, 1, 1]} : vector<1x8x96xf32> to vector<1x8x8xf32>
    %92 = arith.truncf %91 : vector<1x8x8xf32> to vector<1x8x8xbf16>
    %93 = vector.extract_strided_slice %12 {offsets = [0, 0, 88], sizes = [1, 8, 8], strides = [1, 1, 1]} : vector<1x8x96xf32> to vector<1x8x8xf32>
    %94 = arith.truncf %93 : vector<1x8x8xf32> to vector<1x8x8xbf16>
    "tpu.trace_start"() <{level = 10 : i32, message = "bqd,bkd->bqk"}> : () -> ()
    %cst_27 = arith.constant dense<0.000000e+00> : vector<1x8x8xf32>
    %95 = tpu.matmul %90, %92, %cst_27 {dimension_numbers = #tpu.dot_dimension_numbers<[2], [2], [1], [1], [0, 0, 0, 1, 1, 1], [0], [0]>} : vector<1x8x8xbf16>, vector<1x8x8xbf16>, vector<1x8x8xf32> -> vector<1x8x8xf32>
    %cst_28 = arith.constant -1.000000e+30 : f32
    "tpu.trace_stop"() : () -> ()
    %96 = vector.broadcast %cst_28 : f32 to vector<1x8x8xf32>
    %97 = arith.select %16, %95, %96 : vector<1x8x8xi1>, vector<1x8x8xf32>
    %cst_29 = arith.constant dense<0xFF800000> : vector<1x8xf32>
    %98 = vector.multi_reduction <maximumf>, %97, %cst_29 [2] : vector<1x8x8xf32> to vector<1x8xf32>
    %99 = vector.shape_cast %98 : vector<1x8xf32> to vector<1x8x1xf32>
    %100 = vector.broadcast %99 : vector<1x8x1xf32> to vector<1x8x8xf32>
    %101 = arith.subf %97, %100 : vector<1x8x8xf32>
    %102 = math.exp %101 : vector<1x8x8xf32>
    %cst_30 = arith.constant dense<0.000000e+00> : vector<1x8xf32>
    %103 = vector.multi_reduction <add>, %102, %cst_30 [2] : vector<1x8x8xf32> to vector<1x8xf32>
    %104 = vector.shape_cast %103 : vector<1x8xf32> to vector<1x8x1xf32>
    %105 = tpu.reciprocal %104 {approx = true} : vector<1x8x1xf32> -> vector<1x8x1xf32>
    %106 = vector.broadcast %105 : vector<1x8x1xf32> to vector<1x8x8xf32>
    %107 = arith.mulf %102, %106 : vector<1x8x8xf32>
    %108 = arith.truncf %107 : vector<1x8x8xf32> to vector<1x8x8xbf16>
    "tpu.trace_start"() <{level = 10 : i32, message = "bqk,bkd->bqd"}> : () -> ()
    %cst_31 = arith.constant dense<0.000000e+00> : vector<1x8x8xf32>
    %109 = tpu.matmul %108, %94, %cst_31 {dimension_numbers = #tpu.dot_dimension_numbers<[2], [1], [1], [2], [0, 0, 0, 1, 1, 2], [0], [0]>} : vector<1x8x8xbf16>, vector<1x8x8xbf16>, vector<1x8x8xf32> -> vector<1x8x8xf32>
    "tpu.trace_stop"() : () -> ()
    %110 = vector.shape_cast %109 : vector<1x8x8xf32> to vector<8x8xf32>
    %111 = arith.truncf %110 : vector<8x8xf32> to vector<8x8xbf16>
    %c0_32 = arith.constant 0 : index
    %c24 = arith.constant 24 : index
    %112 = vector.load %arg20[%c0_32, %c24] : memref<8x32xbf16, #tpu.memory_space<vmem>>, vector<8x8xbf16>
    tpu.vector_store %arg20[%c0_32, %c24], %111 {strides = array<i32>} : memref<8x32xbf16, #tpu.memory_space<vmem>>, vector<8x8xbf16>,
    %c0_33 = arith.constant 0 : index
    %c0_34 = arith.constant 0 : index
    %113 = vector.load %arg20[%c0_33, %c0_34] : memref<8x32xbf16, #tpu.memory_space<vmem>>, vector<8x32xbf16>
    %c0_35 = arith.constant 0 : index
    %c0_36 = arith.constant 0 : index
    %c0_37 = arith.constant 0 : index
    %114 = vector.load %arg6[%c0_35, %c0_36, %c0_37] : memref<1x32x32xbf16, #tpu.memory_space<vmem>>, vector<1x32x32xbf16>
    %115 = vector.shape_cast %114 : vector<1x32x32xbf16> to vector<32x32xbf16>
    %cst_38 = arith.constant dense<0.000000e+00> : vector<8x32xf32>
    %116 = tpu.matmul %113, %115, %cst_38 {dimension_numbers = #tpu.dot_dimension_numbers<[1], [0], [0], [1], [0, 0, 1, 1], [], []>} : vector<8x32xbf16>, vector<32x32xbf16>, vector<8x32xf32> -> vector<8x32xf32>
    %c0_39 = arith.constant 0 : index
    %c0_40 = arith.constant 0 : index
    %c0_41 = arith.constant 0 : index
    %117 = vector.load %arg7[%c0_39, %c0_40, %c0_41] : memref<1x1x32xf32, #tpu.memory_space<vmem>>, vector<1x1x32xf32>
    %118 = vector.shape_cast %117 : vector<1x1x32xf32> to vector<1x32xf32>
    %119 = vector.broadcast %118 : vector<1x32xf32> to vector<8x32xf32>
    %120 = arith.addf %116, %119 : vector<8x32xf32>
    %121 = arith.addf %3, %120 : vector<8x32xf32>
    %c0_42 = arith.constant 0 : index
    %c0_43 = arith.constant 0 : index
    %c0_44 = arith.constant 0 : index
    %122 = vector.load %arg12[%c0_42, %c0_43, %c0_44] : memref<1x1x32xf32, #tpu.memory_space<vmem>>, vector<1x1x32xf32>
    %123 = vector.shape_cast %122 : vector<1x1x32xf32> to vector<1x32xf32>
    %c0_45 = arith.constant 0 : index
    %c0_46 = arith.constant 0 : index
    %c0_47 = arith.constant 0 : index
    %124 = vector.load %arg13[%c0_45, %c0_46, %c0_47] : memref<1x1x32xf32, #tpu.memory_space<vmem>>, vector<1x1x32xf32>
    %125 = vector.shape_cast %124 : vector<1x1x32xf32> to vector<1x32xf32>
    %cst_48 = arith.constant dense<0.000000e+00> : vector<8xf32>
    %126 = vector.multi_reduction <add>, %121, %cst_48 [1] : vector<8x32xf32> to vector<8xf32>
    %127 = vector.shape_cast %126 : vector<8xf32> to vector<8x1xf32>
    %cst_49 = arith.constant 3.200000e+01 : f32
    %128 = vector.broadcast %cst_49 : f32 to vector<8x1xf32>
    %129 = arith.divf %127, %128 : vector<8x1xf32>
    %130 = vector.broadcast %129 : vector<8x1xf32> to vector<8x32xf32>
    %131 = arith.subf %121, %130 : vector<8x32xf32>
    %132 = arith.mulf %131, %131 : vector<8x32xf32>
    %cst_50 = arith.constant dense<0.000000e+00> : vector<8xf32>
    %133 = vector.multi_reduction <add>, %132, %cst_50 [1] : vector<8x32xf32> to vector<8xf32>
    %134 = vector.shape_cast %133 : vector<8xf32> to vector<8x1xf32>
    %cst_51 = arith.constant 3.200000e+01 : f32
    %135 = vector.broadcast %cst_51 : f32 to vector<8x1xf32>
    %136 = arith.divf %134, %135 : vector<8x1xf32>
    %137 = vector.broadcast %129 : vector<8x1xf32> to vector<8x32xf32>
    %138 = arith.subf %121, %137 : vector<8x32xf32>
    %cst_52 = arith.constant 9.99999974E-6 : f32
    %139 = vector.broadcast %cst_52 : f32 to vector<8x1xf32>
    %140 = arith.addf %136, %139 : vector<8x1xf32>
    %141 = math.rsqrt %140 : vector<8x1xf32>
    %142 = vector.broadcast %141 : vector<8x1xf32> to vector<8x32xf32>
    %143 = arith.mulf %138, %142 : vector<8x32xf32>
    %144 = vector.broadcast %123 : vector<1x32xf32> to vector<8x32xf32>
    %145 = arith.mulf %143, %144 : vector<8x32xf32>
    %146 = vector.broadcast %125 : vector<1x32xf32> to vector<8x32xf32>
    %147 = arith.addf %145, %146 : vector<8x32xf32>
    %148 = arith.truncf %147 : vector<8x32xf32> to vector<8x32xbf16>
    %c0_53 = arith.constant 0 : index
    %c0_54 = arith.constant 0 : index
    %c0_55 = arith.constant 0 : index
    %149 = vector.load %arg8[%c0_53, %c0_54, %c0_55] : memref<1x32x32xbf16, #tpu.memory_space<vmem>>, vector<1x32x32xbf16>
    %150 = vector.shape_cast %149 : vector<1x32x32xbf16> to vector<32x32xbf16>
    %cst_56 = arith.constant dense<0.000000e+00> : vector<8x32xf32>
    %151 = tpu.matmul %148, %150, %cst_56 {dimension_numbers = #tpu.dot_dimension_numbers<[1], [0], [0], [1], [0, 0, 1, 1], [], []>} : vector<8x32xbf16>, vector<32x32xbf16>, vector<8x32xf32> -> vector<8x32xf32>
    %c0_57 = arith.constant 0 : index
    %c0_58 = arith.constant 0 : index
    %c0_59 = arith.constant 0 : index
    %152 = vector.load %arg9[%c0_57, %c0_58, %c0_59] : memref<1x1x32xf32, #tpu.memory_space<vmem>>, vector<1x1x32xf32>
    %153 = vector.shape_cast %152 : vector<1x1x32xf32> to vector<1x32xf32>
    %154 = vector.broadcast %153 : vector<1x32xf32> to vector<8x32xf32>
    %155 = arith.addf %151, %154 : vector<8x32xf32>
    %cst_60 = arith.constant 0.000000e+00 : f32
    %156 = vector.broadcast %cst_60 : f32 to vector<8x32xf32>
    %157 = arith.maximumf %155, %156 : vector<8x32xf32>
    %158 = arith.truncf %157 : vector<8x32xf32> to vector<8x32xbf16>
    %c0_61 = arith.constant 0 : index
    %c0_62 = arith.constant 0 : index
    %c0_63 = arith.constant 0 : index
    %159 = vector.load %arg10[%c0_61, %c0_62, %c0_63] : memref<1x32x32xbf16, #tpu.memory_space<vmem>>, vector<1x32x32xbf16>
    %160 = vector.shape_cast %159 : vector<1x32x32xbf16> to vector<32x32xbf16>
    %cst_64 = arith.constant dense<0.000000e+00> : vector<8x32xf32>
    %161 = tpu.matmul %158, %160, %cst_64 {dimension_numbers = #tpu.dot_dimension_numbers<[1], [0], [0], [1], [0, 0, 1, 1], [], []>} : vector<8x32xbf16>, vector<32x32xbf16>, vector<8x32xf32> -> vector<8x32xf32>
    %c0_65 = arith.constant 0 : index
    %c0_66 = arith.constant 0 : index
    %c0_67 = arith.constant 0 : index
    %162 = vector.load %arg11[%c0_65, %c0_66, %c0_67] : memref<1x1x32xf32, #tpu.memory_space<vmem>>, vector<1x1x32xf32>
    %163 = vector.shape_cast %162 : vector<1x1x32xf32> to vector<1x32xf32>
    %164 = vector.broadcast %163 : vector<1x32xf32> to vector<8x32xf32>
    %165 = arith.addf %161, %164 : vector<8x32xf32>
    %166 = arith.addf %147, %165 : vector<8x32xf32>
    %c0_68 = arith.constant 0 : index
    %c0_69 = arith.constant 0 : index
    %c0_70 = arith.constant 0 : index
    %167 = vector.load %arg14[%c0_68, %c0_69, %c0_70] : memref<1x1x32xf32, #tpu.memory_space<vmem>>, vector<1x1x32xf32>
    %168 = vector.shape_cast %167 : vector<1x1x32xf32> to vector<1x32xf32>
    %c0_71 = arith.constant 0 : index
    %c0_72 = arith.constant 0 : index
    %c0_73 = arith.constant 0 : index
    %169 = vector.load %arg15[%c0_71, %c0_72, %c0_73] : memref<1x1x32xf32, #tpu.memory_space<vmem>>, vector<1x1x32xf32>
    %170 = vector.shape_cast %169 : vector<1x1x32xf32> to vector<1x32xf32>
    %cst_74 = arith.constant dense<0.000000e+00> : vector<8xf32>
    %171 = vector.multi_reduction <add>, %166, %cst_74 [1] : vector<8x32xf32> to vector<8xf32>
    %172 = vector.shape_cast %171 : vector<8xf32> to vector<8x1xf32>
    %cst_75 = arith.constant 3.200000e+01 : f32
    %173 = vector.broadcast %cst_75 : f32 to vector<8x1xf32>
    %174 = arith.divf %172, %173 : vector<8x1xf32>
    %175 = vector.broadcast %174 : vector<8x1xf32> to vector<8x32xf32>
    %176 = arith.subf %166, %175 : vector<8x32xf32>
    %177 = arith.mulf %176, %176 : vector<8x32xf32>
    %cst_76 = arith.constant dense<0.000000e+00> : vector<8xf32>
    %178 = vector.multi_reduction <add>, %177, %cst_76 [1] : vector<8x32xf32> to vector<8xf32>
    %179 = vector.shape_cast %178 : vector<8xf32> to vector<8x1xf32>
    %cst_77 = arith.constant 3.200000e+01 : f32
    %180 = vector.broadcast %cst_77 : f32 to vector<8x1xf32>
    %181 = arith.divf %179, %180 : vector<8x1xf32>
    %182 = vector.broadcast %174 : vector<8x1xf32> to vector<8x32xf32>
    %183 = arith.subf %166, %182 : vector<8x32xf32>
    %cst_78 = arith.constant 9.99999974E-6 : f32
    %184 = vector.broadcast %cst_78 : f32 to vector<8x1xf32>
    %185 = arith.addf %181, %184 : vector<8x1xf32>
    %186 = math.rsqrt %185 : vector<8x1xf32>
    %187 = vector.broadcast %186 : vector<8x1xf32> to vector<8x32xf32>
    %188 = arith.mulf %183, %187 : vector<8x32xf32>
    %189 = vector.broadcast %168 : vector<1x32xf32> to vector<8x32xf32>
    %190 = arith.mulf %188, %189 : vector<8x32xf32>
    %191 = vector.broadcast %170 : vector<1x32xf32> to vector<8x32xf32>
    %192 = arith.addf %190, %191 : vector<8x32xf32>
    %c0_79 = arith.constant 0 : index
    %c0_80 = arith.constant 0 : index
    %193 = vector.load %arg19[%c0_79, %c0_80] : memref<8x32xf32, #tpu.memory_space<vmem>>, vector<8x32xf32>
    tpu.vector_store %arg19[%c0_79, %c0_80], %192 {strides = array<i32>} : memref<8x32xf32, #tpu.memory_space<vmem>>, vector<8x32xf32>,
    %c1_i32 = arith.constant 1 : i32
    %194 = arith.cmpi eq, %arg1, %c1_i32 : i32
    %195 = arith.extui %194 : i1 to i32
    %c0_i32_81 = arith.constant 0 : i32
    %196 = arith.cmpi ne, %195, %c0_i32_81 : i32
    scf.if %196 {
      %197 = arith.truncf %192 : vector<8x32xf32> to vector<8x32xbf16>
      %c0_82 = arith.constant 0 : index
      %c0_83 = arith.constant 0 : index
      %198 = vector.load %arg16[%c0_82, %c0_83] : memref<32x128xbf16, #tpu.memory_space<vmem>>, vector<32x128xbf16>
      %cst_84 = arith.constant dense<0.000000e+00> : vector<8x128xf32>
      %199 = tpu.matmul %197, %198, %cst_84 {dimension_numbers = #tpu.dot_dimension_numbers<[1], [0], [0], [1], [0, 0, 1, 1], [], []>} : vector<8x32xbf16>, vector<32x128xbf16>, vector<8x128xf32> -> vector<8x128xf32>
      %c0_85 = arith.constant 0 : index
      %c0_86 = arith.constant 0 : index
      %200 = vector.load %arg17[%c0_85, %c0_86] : memref<1x128xf32, #tpu.memory_space<vmem>>, vector<1x128xf32>
      %201 = vector.broadcast %200 : vector<1x128xf32> to vector<8x128xf32>
      %202 = arith.addf %199, %201 : vector<8x128xf32>
      %cst_87 = arith.constant dense<0xFF800000> : vector<8xf32>
      %203 = vector.multi_reduction <maximumf>, %202, %cst_87 [1] : vector<8x128xf32> to vector<8xf32>
      %204 = vector.shape_cast %203 : vector<8xf32> to vector<8x1xf32>
      %205 = vector.broadcast %204 : vector<8x1xf32> to vector<8x128xf32>
      %206 = arith.subf %202, %205 : vector<8x128xf32>
      %207 = math.exp %206 : vector<8x128xf32>
      %cst_88 = arith.constant dense<0.000000e+00> : vector<8xf32>
      %208 = vector.multi_reduction <add>, %207, %cst_88 [1] : vector<8x128xf32> to vector<8xf32>
      %209 = vector.shape_cast %208 : vector<8xf32> to vector<8x1xf32>
      %210 = math.log %209 : vector<8x1xf32>
      %211 = arith.addf %204, %210 : vector<8x1xf32>
      %212 = vector.broadcast %211 : vector<8x1xf32> to vector<8x128xf32>
      %213 = arith.subf %202, %212 : vector<8x128xf32>
      %214 = vector.shape_cast %213 : vector<8x128xf32> to vector<1x8x128xf32>
      %c0_89 = arith.constant 0 : index
      %c0_90 = arith.constant 0 : index
      %c0_91 = arith.constant 0 : index
      %215 = vector.load %arg18[%c0_89, %c0_90, %c0_91] : memref<1x8x128xf32, #tpu.memory_space<vmem>>, vector<1x8x128xf32>
      tpu.vector_store %arg18[%c0_89, %c0_90, %c0_91], %214 {strides = array<i32>} : memref<1x8x128xf32, #tpu.memory_space<vmem>>, vector<1x8x128xf32>,
    } else {
    }
    return
  }
  func.func @transform_0(%arg0: i32, %arg1: i32) -> (i32, i32, i32) {
    %c0_i32 = arith.constant 0 : i32
    %c0_i32_0 = arith.constant 0 : i32
    %c0_i32_1 = arith.constant 0 : i32
    return %arg0, %c0_i32, %c0_i32_0 : i32, i32, i32
  }
  func.func @transform_1(%arg0: i32, %arg1: i32) -> (i32, i32) {
    %c0_i32 = arith.constant 0 : i32
    %c0_i32_0 = arith.constant 0 : i32
    %c0_i32_1 = arith.constant 0 : i32
    return %c0_i32, %c0_i32_0 : i32, i32
  }
  func.func @transform_2(%arg0: i32, %arg1: i32) -> (i32, i32, i32) {
    %c0_i32 = arith.constant 0 : i32
    %c0_i32_0 = arith.constant 0 : i32
    %c0_i32_1 = arith.constant 0 : i32
    return %arg1, %c0_i32, %c0_i32_0 : i32, i32, i32
  }
  func.func @transform_3(%arg0: i32, %arg1: i32) -> (i32, i32, i32) {
    %c0_i32 = arith.constant 0 : i32
    %c0_i32_0 = arith.constant 0 : i32
    %c0_i32_1 = arith.constant 0 : i32
    return %arg1, %c0_i32, %c0_i32_0 : i32, i32, i32
  }
  func.func @transform_4(%arg0: i32, %arg1: i32) -> (i32, i32, i32) {
    %c0_i32 = arith.constant 0 : i32
    %c0_i32_0 = arith.constant 0 : i32
    %c0_i32_1 = arith.constant 0 : i32
    return %arg1, %c0_i32, %c0_i32_0 : i32, i32, i32
  }
  func.func @transform_5(%arg0: i32, %arg1: i32) -> (i32, i32, i32) {
    %c0_i32 = arith.constant 0 : i32
    %c0_i32_0 = arith.constant 0 : i32
    %c0_i32_1 = arith.constant 0 : i32
    return %arg1, %c0_i32, %c0_i32_0 : i32, i32, i32
  }
  func.func @transform_6(%arg0: i32, %arg1: i32) -> (i32, i32, i32) {
    %c0_i32 = arith.constant 0 : i32
    %c0_i32_0 = arith.constant 0 : i32
    %c0_i32_1 = arith.constant 0 : i32
    return %arg1, %c0_i32, %c0_i32_0 : i32, i32, i32
  }
  func.func @transform_7(%arg0: i32, %arg1: i32) -> (i32, i32, i32) {
    %c0_i32 = arith.constant 0 : i32
    %c0_i32_0 = arith.constant 0 : i32
    %c0_i32_1 = arith.constant 0 : i32
    return %arg1, %c0_i32, %c0_i32_0 : i32, i32, i32
  }
  func.func @transform_8(%arg0: i32, %arg1: i32) -> (i32, i32, i32) {
    %c0_i32 = arith.constant 0 : i32
    %c0_i32_0 = arith.constant 0 : i32
    %c0_i32_1 = arith.constant 0 : i32
    return %arg1, %c0_i32, %c0_i32_0 : i32, i32, i32
  }
  func.func @transform_9(%arg0: i32, %arg1: i32) -> (i32, i32, i32) {
    %c0_i32 = arith.constant 0 : i32
    %c0_i32_0 = arith.constant 0 : i32
    %c0_i32_1 = arith.constant 0 : i32
    return %arg1, %c0_i32, %c0_i32_0 : i32, i32, i32
  }
  func.func @transform_10(%arg0: i32, %arg1: i32) -> (i32, i32, i32) {
    %c0_i32 = arith.constant 0 : i32
    %c0_i32_0 = arith.constant 0 : i32
    %c0_i32_1 = arith.constant 0 : i32
    return %arg1, %c0_i32, %c0_i32_0 : i32, i32, i32
  }
  func.func @transform_11(%arg0: i32, %arg1: i32) -> (i32, i32, i32) {
    %c0_i32 = arith.constant 0 : i32
    %c0_i32_0 = arith.constant 0 : i32
    %c0_i32_1 = arith.constant 0 : i32
    return %arg1, %c0_i32, %c0_i32_0 : i32, i32, i32
  }
  func.func @transform_12(%arg0: i32, %arg1: i32) -> (i32, i32, i32) {
    %c0_i32 = arith.constant 0 : i32
    %c0_i32_0 = arith.constant 0 : i32
    %c0_i32_1 = arith.constant 0 : i32
    return %arg1, %c0_i32, %c0_i32_0 : i32, i32, i32
  }
  func.func @transform_13(%arg0: i32, %arg1: i32) -> (i32, i32, i32) {
    %c0_i32 = arith.constant 0 : i32
    %c0_i32_0 = arith.constant 0 : i32
    %c0_i32_1 = arith.constant 0 : i32
    return %arg1, %c0_i32, %c0_i32_0 : i32, i32, i32
  }
  func.func @transform_14(%arg0: i32, %arg1: i32) -> (i32, i32) {
    %c0_i32 = arith.constant 0 : i32
    %c0_i32_0 = arith.constant 0 : i32
    %c0_i32_1 = arith.constant 0 : i32
    return %c0_i32, %c0_i32_0 : i32, i32
  }
  func.func @transform_15(%arg0: i32, %arg1: i32) -> (i32, i32) {
    %c0_i32 = arith.constant 0 : i32
    %c0_i32_0 = arith.constant 0 : i32
    %c0_i32_1 = arith.constant 0 : i32
    return %c0_i32, %c0_i32_0 : i32, i32
  }
  func.func @transform_16(%arg0: i32, %arg1: i32) -> (i32, i32, i32) {
    %c0_i32 = arith.constant 0 : i32
    %c0_i32_0 = arith.constant 0 : i32
    %c0_i32_1 = arith.constant 0 : i32
    return %arg0, %c0_i32, %c0_i32_0 : i32, i32, i32
  }
}

</mosaic_0001>

<llo_original>
// kernel: self_mha_decoder_forward.1
$region0: #{self_mha_decoder_forward.1}
  #allocation0 [shape = 'u32[]', space=smem, size = 0x4, offset = 0x4, fixed_abs, tag = 'smem constant byte address 0x4 - core index']
  #allocation1 [shape = 'u32[72,128]{1,0:T(1,128)}', space=vmem, size = 0x9000, scoped, tag = 'internal scratch']
  #allocation2 [shape = 'f32[8,32]{1,0:T(8,128)}', space=vmem, size = 0x1000, scoped, tag = 'scratch operand']
  #allocation3 [shape = 'bf16[8,32]{1,0:T(8,128)(2,1)}', space=vmem, size = 0x800, scoped, tag = 'scratch operand']
  %s0 = inlined_call_operand.vmem [shape: f32[2,8,32], index: 0, kind: input, shape index: {}]
  %s1 = inlined_call_operand.vmem [shape: f32[8,32], index: 1, kind: input, shape index: {}]
  %s2 = inlined_call_operand.vmem [shape: bf16[2,32,96], index: 2, kind: input, shape index: {}]
  %s3 = inlined_call_operand.vmem [shape: f32[2,1,96], index: 3, kind: input, shape index: {}]
  %s4 = inlined_call_operand.vmem [shape: bf16[2,32,32], index: 4, kind: input, shape index: {}]
  %s5 = inlined_call_operand.vmem [shape: f32[2,1,32], index: 5, kind: input, shape index: {}]
  %s6 = inlined_call_operand.vmem [shape: bf16[2,32,32], index: 6, kind: input, shape index: {}]
  %s7 = inlined_call_operand.vmem [shape: f32[2,1,32], index: 7, kind: input, shape index: {}]
  %s8 = inlined_call_operand.vmem [shape: bf16[2,32,32], index: 8, kind: input, shape index: {}]
  %s9 = inlined_call_operand.vmem [shape: f32[2,1,32], index: 9, kind: input, shape index: {}]
  %s10 = inlined_call_operand.vmem [shape: f32[2,1,32], index: 10, kind: input, shape index: {}]
  %s11 = inlined_call_operand.vmem [shape: f32[2,1,32], index: 11, kind: input, shape index: {}]
  %s12 = inlined_call_operand.vmem [shape: f32[2,1,32], index: 12, kind: input, shape index: {}]
  %s13 = inlined_call_operand.vmem [shape: f32[2,1,32], index: 13, kind: input, shape index: {}]
  %s14 = inlined_call_operand.vmem [shape: bf16[32,128], index: 14, kind: input, shape index: {}]
  %s15 = inlined_call_operand.vmem [shape: f32[1,128], index: 15, kind: input, shape index: {}]
  %s16 = inlined_call_operand.hbm [shape: f32[2,8,128], index: 16, kind: output, shape index: {}]
  %s17 = sld [smem:[#allocation0]]
  $region105: #{self_mha_decoder_forward.1} parent=0
    _
  %s19 = ssub.s32 1, %s17
  %s20 = scalar_select 0, %s19, %s17
  $region1: #{self_mha_decoder_forward.1} parent=0
    #allocation4 [shape = 'u8[8192]{0}', space=vmem, size = 0x2000, scoped, tag = 'output window, operand 0']
    #allocation5 [shape = 's32[2]{0}', space=sflag, size = 0x8, scoped, tag = 'scoped memory for self_mha_decoder_forward.1']
    %21 = vsyncpa [#allocation5], 0
    %s22 = scalar_lea.sflag [#allocation5], 1
    %23 = vsyncpa %s22, 0
    loop: start=0, step=1, limit=6
    $region2: #{self_mha_decoder_forward.1} parent=1 // loop_pre_header
      _
    $region3: #{self_mha_decoder_forward.1} parent=1 // loop_header
      %s25 = sphi 0, %s29
      %p26 = scmp.ge.s32.totalorder %s25, 6
      %s32 = sphi 0, %s44
      %s33 = sphi 0, %s40
      %s34 = sphi 0, %s32
      %s35 = sphi 0, %s33
      %s36 = sphi 0, %s34
      %s37 = sphi 0, %s35
      %s47 = sphi 0, %s49
      %s50 = sphi 0, %s47
      %s51 = sphi 0, %s50
      %s67 = sphi 0, %s51
      %s71 = sphi 0, %s71
      %s73 = sphi 0, %s71
      %s74 = sphi 0, %s73
      %s88 = sphi 0, %s74
      %s94 = sphi 0, %s96
      %s97 = sphi 0, %s94
      %s98 = sphi 0, %s97
      %s114 = sphi 0, %s98
      %s120 = sphi 0, %s122
      %s123 = sphi 0, %s120
      %s124 = sphi 0, %s123
      %s140 = sphi 0, %s124
      %s146 = sphi 0, %s148
      %s149 = sphi 0, %s146
      %s150 = sphi 0, %s149
      %s166 = sphi 0, %s150
      %s172 = sphi 0, %s174
      %s175 = sphi 0, %s172
      %s176 = sphi 0, %s175
      %s192 = sphi 0, %s176
      %s198 = sphi 0, %s200
      %s201 = sphi 0, %s198
      %s202 = sphi 0, %s201
      %s218 = sphi 0, %s202
      %s224 = sphi 0, %s226
      %s227 = sphi 0, %s224
      %s228 = sphi 0, %s227
      %s244 = sphi 0, %s228
      %s250 = sphi 0, %s252
      %s253 = sphi 0, %s250
      %s254 = sphi 0, %s253
      %s270 = sphi 0, %s254
      %s276 = sphi 0, %s278
      %s279 = sphi 0, %s276
      %s280 = sphi 0, %s279
      %s296 = sphi 0, %s280
      %s302 = sphi 0, %s304
      %s305 = sphi 0, %s302
      %s306 = sphi 0, %s305
      %s322 = sphi 0, %s306
      %s328 = sphi 0, %s330
      %s331 = sphi 0, %s328
      %s332 = sphi 0, %s331
      %s348 = sphi 0, %s332
      %s354 = sphi 0, %s356
      %s357 = sphi 0, %s354
      %s358 = sphi 0, %s357
      %s374 = sphi 0, %s358
      %s380 = sphi 0, %s382
      %s383 = sphi 0, %s380
      %s384 = sphi 0, %s383
      %s400 = sphi 0, %s384
      %s404 = sphi 0, %s404
      %s406 = sphi 0, %s404
      %s407 = sphi 0, %s406
      %s421 = sphi 0, %s407
      %s425 = sphi 0, %s425
      %s427 = sphi 0, %s425
      %s428 = sphi 0, %s427
      %s442 = sphi 0, %s428
      %s448 = sphi 0, %s450
      %s451 = sphi 0, %s448
      %s452 = sphi 0, %s451
      %s468 = sphi 0, %s452
    $region4: #{self_mha_decoder_forward.1} parent=1 // loop_header_branch
      %28 = sbr.rel (%p26) target = $region8
    $region5: #{self_mha_decoder_forward.1} parent=1 // loop_body
      %s30 = ssub.s32 %s25, 1
      %s31 = ssub.s32 %s25, 2
      %s38 = sadd.s32 1, %s33
      %p39 = scmp.ge.s32.totalorder %s38, 2
      %s40 = scalar_select %p39, 0, %s38
      %s41 = sadd.s32 1, %s32
      %s42 = scalar_select %p39, %s41, %s32
      %p43 = scmp.ge.s32.totalorder %s42, 2
      %s44 = scalar_select %p43, 0, %s42
      %s45 = ssub.s32 %s32, %s44
      %p46 = scmp.eq.s32.totalorder %s45, 0
      %s48 = sadd.s32 %s47, 1
      %s49 = scalar_select %p46, %s47, %s48
      %p52 = pneg %p46
      %p53 = scmp.eq.s32.totalorder %s25, 3
      %p54 = por %p52, %p53
      %p55 = scmp.ne.s32.totalorder %s47, %s50
      %p56 = scmp.eq.s32.totalorder %s25, 0
      %p57 = por %p55, %p56
      %p58 = scmp.ne.s32.totalorder %s47, %s50
      %p59 = scmp.eq.s32.totalorder %s30, 3
      %p60 = por %p58, %p59
      %p61 = scmp.ne.s32.totalorder %s50, %s51
      %p62 = scmp.eq.s32.totalorder %s30, 0
      %p63 = por %p61, %p62
      %p64 = scmp.ne.s32.totalorder %s50, %s51
      %p65 = scmp.eq.s32.totalorder %s31, 3
      %p66 = por %p64, %p65
      %p68 = scmp.ne.s32.totalorder %s51, %s67
      %p69 = scmp.eq.s32.totalorder %s31, 0
      %p70 = por %p68, %p69
      %s72 = sadd.s32 %s71, 1
      %p75 = scmp.eq.s32.totalorder %s25, 3
      %p76 = scmp.ne.s32.totalorder %s71, %s73
      %p77 = scmp.eq.s32.totalorder %s25, 0
      %p78 = por %p76, %p77
      %p79 = scmp.ne.s32.totalorder %s71, %s73
      %p80 = scmp.eq.s32.totalorder %s30, 3
      %p81 = por %p79, %p80
      %p82 = scmp.ne.s32.totalorder %s73, %s74
      %p83 = scmp.eq.s32.totalorder %s30, 0
      %p84 = por %p82, %p83
      %p85 = scmp.ne.s32.totalorder %s73, %s74
      %p86 = scmp.eq.s32.totalorder %s31, 3
      %p87 = por %p85, %p86
      %p89 = scmp.ne.s32.totalorder %s74, %s88
      %p90 = scmp.eq.s32.totalorder %s31, 0
      %p91 = por %p89, %p90
      %s92 = ssub.s32 %s33, %s40
      %p93 = scmp.eq.s32.totalorder %s92, 0
      %s95 = sadd.s32 %s94, 1
      %s96 = scalar_select %p93, %s94, %s95
      %p99 = pneg %p93
      %p100 = scmp.eq.s32.totalorder %s25, 3
      %p101 = por %p99, %p100
      %p102 = scmp.ne.s32.totalorder %s94, %s97
      %p103 = scmp.eq.s32.totalorder %s25, 0
      %p104 = por %p102, %p103
      %p105 = scmp.ne.s32.totalorder %s94, %s97
      %p106 = scmp.eq.s32.totalorder %s30, 3
      %p107 = por %p105, %p106
      %p108 = scmp.ne.s32.totalorder %s97, %s98
      %p109 = scmp.eq.s32.totalorder %s30, 0
      %p110 = por %p108, %p109
      %p111 = scmp.ne.s32.totalorder %s97, %s98
      %p112 = scmp.eq.s32.totalorder %s31, 3
      %p113 = por %p111, %p112
      %p115 = scmp.ne.s32.totalorder %s98, %s114
      %p116 = scmp.eq.s32.totalorder %s31, 0
      %p117 = por %p115, %p116
      %s118 = ssub.s32 %s33, %s40
      %p119 = scmp.eq.s32.totalorder %s118, 0
      %s121 = sadd.s32 %s120, 1
      %s122 = scalar_select %p119, %s120, %s121
      %p125 = pneg %p119
      %p126 = scmp.eq.s32.totalorder %s25, 3
      %p127 = por %p125, %p126
      %p128 = scmp.ne.s32.totalorder %s120, %s123
      %p129 = scmp.eq.s32.totalorder %s25, 0
      %p130 = por %p128, %p129
      %p131 = scmp.ne.s32.totalorder %s120, %s123
      %p132 = scmp.eq.s32.totalorder %s30, 3
      %p133 = por %p131, %p132
      %p134 = scmp.ne.s32.totalorder %s123, %s124
      %p135 = scmp.eq.s32.totalorder %s30, 0
      %p136 = por %p134, %p135
      %p137 = scmp.ne.s32.totalorder %s123, %s124
      %p138 = scmp.eq.s32.totalorder %s31, 3
      %p139 = por %p137, %p138
      %p141 = scmp.ne.s32.totalorder %s124, %s140
      %p142 = scmp.eq.s32.totalorder %s31, 0
      %p143 = por %p141, %p142
      %s144 = ssub.s32 %s33, %s40
      %p145 = scmp.eq.s32.totalorder %s144, 0
      %s147 = sadd.s32 %s146, 1
      %s148 = scalar_select %p145, %s146, %s147
      %p151 = pneg %p145
      %p152 = scmp.eq.s32.totalorder %s25, 3
      %p153 = por %p151, %p152
      %p154 = scmp.ne.s32.totalorder %s146, %s149
      %p155 = scmp.eq.s32.totalorder %s25, 0
      %p156 = por %p154, %p155
      %p157 = scmp.ne.s32.totalorder %s146, %s149
      %p158 = scmp.eq.s32.totalorder %s30, 3
      %p159 = por %p157, %p158
      %p160 = scmp.ne.s32.totalorder %s149, %s150
      %p161 = scmp.eq.s32.totalorder %s30, 0
      %p162 = por %p160, %p161
      %p163 = scmp.ne.s32.totalorder %s149, %s150
      %p164 = scmp.eq.s32.totalorder %s31, 3
      %p165 = por %p163, %p164
      %p167 = scmp.ne.s32.totalorder %s150, %s166
      %p168 = scmp.eq.s32.totalorder %s31, 0
      %p169 = por %p167, %p168
      %s170 = ssub.s32 %s33, %s40
      %p171 = scmp.eq.s32.totalorder %s170, 0
      %s173 = sadd.s32 %s172, 1
      %s174 = scalar_select %p171, %s172, %s173
      %p177 = pneg %p171
      %p178 = scmp.eq.s32.totalorder %s25, 3
      %p179 = por %p177, %p178
      %p180 = scmp.ne.s32.totalorder %s172, %s175
      %p181 = scmp.eq.s32.totalorder %s25, 0
      %p182 = por %p180, %p181
      %p183 = scmp.ne.s32.totalorder %s172, %s175
      %p184 = scmp.eq.s32.totalorder %s30, 3
      %p185 = por %p183, %p184
      %p186 = scmp.ne.s32.totalorder %s175, %s176
      %p187 = scmp.eq.s32.totalorder %s30, 0
      %p188 = por %p186, %p187
      %p189 = scmp.ne.s32.totalorder %s175, %s176
      %p190 = scmp.eq.s32.totalorder %s31, 3
      %p191 = por %p189, %p190
      %p193 = scmp.ne.s32.totalorder %s176, %s192
      %p194 = scmp.eq.s32.totalorder %s31, 0
      %p195 = por %p193, %p194
      %s196 = ssub.s32 %s33, %s40
      %p197 = scmp.eq.s32.totalorder %s196, 0
      %s199 = sadd.s32 %s198, 1
      %s200 = scalar_select %p197, %s198, %s199
      %p203 = pneg %p197
      %p204 = scmp.eq.s32.totalorder %s25, 3
      %p205 = por %p203, %p204
      %p206 = scmp.ne.s32.totalorder %s198, %s201
      %p207 = scmp.eq.s32.totalorder %s25, 0
      %p208 = por %p206, %p207
      %p209 = scmp.ne.s32.totalorder %s198, %s201
      %p210 = scmp.eq.s32.totalorder %s30, 3
      %p211 = por %p209, %p210
      %p212 = scmp.ne.s32.totalorder %s201, %s202
      %p213 = scmp.eq.s32.totalorder %s30, 0
      %p214 = por %p212, %p213
      %p215 = scmp.ne.s32.totalorder %s201, %s202
      %p216 = scmp.eq.s32.totalorder %s31, 3
      %p217 = por %p215, %p216
      %p219 = scmp.ne.s32.totalorder %s202, %s218
      %p220 = scmp.eq.s32.totalorder %s31, 0
      %p221 = por %p219, %p220
      %s222 = ssub.s32 %s33, %s40
      %p223 = scmp.eq.s32.totalorder %s222, 0
      %s225 = sadd.s32 %s224, 1
      %s226 = scalar_select %p223, %s224, %s225
      %p229 = pneg %p223
      %p230 = scmp.eq.s32.totalorder %s25, 3
      %p231 = por %p229, %p230
      %p232 = scmp.ne.s32.totalorder %s224, %s227
      %p233 = scmp.eq.s32.totalorder %s25, 0
      %p234 = por %p232, %p233
      %p235 = scmp.ne.s32.totalorder %s224, %s227
      %p236 = scmp.eq.s32.totalorder %s30, 3
      %p237 = por %p235, %p236
      %p238 = scmp.ne.s32.totalorder %s227, %s228
      %p239 = scmp.eq.s32.totalorder %s30, 0
      %p240 = por %p238, %p239
      %p241 = scmp.ne.s32.totalorder %s227, %s228
      %p242 = scmp.eq.s32.totalorder %s31, 3
      %p243 = por %p241, %p242
      %p245 = scmp.ne.s32.totalorder %s228, %s244
      %p246 = scmp.eq.s32.totalorder %s31, 0
      %p247 = por %p245, %p246
      %s248 = ssub.s32 %s33, %s40
      %p249 = scmp.eq.s32.totalorder %s248, 0
      %s251 = sadd.s32 %s250, 1
      %s252 = scalar_select %p249, %s250, %s251
      %p255 = pneg %p249
      %p256 = scmp.eq.s32.totalorder %s25, 3
      %p257 = por %p255, %p256
      %p258 = scmp.ne.s32.totalorder %s250, %s253
      %p259 = scmp.eq.s32.totalorder %s25, 0
      %p260 = por %p258, %p259
      %p261 = scmp.ne.s32.totalorder %s250, %s253
      %p262 = scmp.eq.s32.totalorder %s30, 3
      %p263 = por %p261, %p262
      %p264 = scmp.ne.s32.totalorder %s253, %s254
      %p265 = scmp.eq.s32.totalorder %s30, 0
      %p266 = por %p264, %p265
      %p267 = scmp.ne.s32.totalorder %s253, %s254
      %p268 = scmp.eq.s32.totalorder %s31, 3
      %p269 = por %p267, %p268
      %p271 = scmp.ne.s32.totalorder %s254, %s270
      %p272 = scmp.eq.s32.totalorder %s31, 0
      %p273 = por %p271, %p272
      %s274 = ssub.s32 %s33, %s40
      %p275 = scmp.eq.s32.totalorder %s274, 0
      %s277 = sadd.s32 %s276, 1
      %s278 = scalar_select %p275, %s276, %s277
      %p281 = pneg %p275
      %p282 = scmp.eq.s32.totalorder %s25, 3
      %p283 = por %p281, %p282
      %p284 = scmp.ne.s32.totalorder %s276, %s279
      %p285 = scmp.eq.s32.totalorder %s25, 0
      %p286 = por %p284, %p285
      %p287 = scmp.ne.s32.totalorder %s276, %s279
      %p288 = scmp.eq.s32.totalorder %s30, 3
      %p289 = por %p287, %p288
      %p290 = scmp.ne.s32.totalorder %s279, %s280
      %p291 = scmp.eq.s32.totalorder %s30, 0
      %p292 = por %p290, %p291
      %p293 = scmp.ne.s32.totalorder %s279, %s280
      %p294 = scmp.eq.s32.totalorder %s31, 3
      %p295 = por %p293, %p294
      %p297 = scmp.ne.s32.totalorder %s280, %s296
      %p298 = scmp.eq.s32.totalorder %s31, 0
      %p299 = por %p297, %p298
      %s300 = ssub.s32 %s33, %s40
      %p301 = scmp.eq.s32.totalorder %s300, 0
      %s303 = sadd.s32 %s302, 1
      %s304 = scalar_select %p301, %s302, %s303
      %p307 = pneg %p301
      %p308 = scmp.eq.s32.totalorder %s25, 3
      %p309 = por %p307, %p308
      %p310 = scmp.ne.s32.totalorder %s302, %s305
      %p311 = scmp.eq.s32.totalorder %s25, 0
      %p312 = por %p310, %p311
      %p313 = scmp.ne.s32.totalorder %s302, %s305
      %p314 = scmp.eq.s32.totalorder %s30, 3
      %p315 = por %p313, %p314
      %p316 = scmp.ne.s32.totalorder %s305, %s306
      %p317 = scmp.eq.s32.totalorder %s30, 0
      %p318 = por %p316, %p317
      %p319 = scmp.ne.s32.totalorder %s305, %s306
      %p320 = scmp.eq.s32.totalorder %s31, 3
      %p321 = por %p319, %p320
      %p323 = scmp.ne.s32.totalorder %s306, %s322
      %p324 = scmp.eq.s32.totalorder %s31, 0
      %p325 = por %p323, %p324
      %s326 = ssub.s32 %s33, %s40
      %p327 = scmp.eq.s32.totalorder %s326, 0
      %s329 = sadd.s32 %s328, 1
      %s330 = scalar_select %p327, %s328, %s329
      %p333 = pneg %p327
      %p334 = scmp.eq.s32.totalorder %s25, 3
      %p335 = por %p333, %p334
      %p336 = scmp.ne.s32.totalorder %s328, %s331
      %p337 = scmp.eq.s32.totalorder %s25, 0
      %p338 = por %p336, %p337
      %p339 = scmp.ne.s32.totalorder %s328, %s331
      %p340 = scmp.eq.s32.totalorder %s30, 3
      %p341 = por %p339, %p340
      %p342 = scmp.ne.s32.totalorder %s331, %s332
      %p343 = scmp.eq.s32.totalorder %s30, 0
      %p344 = por %p342, %p343
      %p345 = scmp.ne.s32.totalorder %s331, %s332
      %p346 = scmp.eq.s32.totalorder %s31, 3
      %p347 = por %p345, %p346
      %p349 = scmp.ne.s32.totalorder %s332, %s348
      %p350 = scmp.eq.s32.totalorder %s31, 0
      %p351 = por %p349, %p350
      %s352 = ssub.s32 %s33, %s40
      %p353 = scmp.eq.s32.totalorder %s352, 0
      %s355 = sadd.s32 %s354, 1
      %s356 = scalar_select %p353, %s354, %s355
      %p359 = pneg %p353
      %p360 = scmp.eq.s32.totalorder %s25, 3
      %p361 = por %p359, %p360
      %p362 = scmp.ne.s32.totalorder %s354, %s357
      %p363 = scmp.eq.s32.totalorder %s25, 0
      %p364 = por %p362, %p363
      %p365 = scmp.ne.s32.totalorder %s354, %s357
      %p366 = scmp.eq.s32.totalorder %s30, 3
      %p367 = por %p365, %p366
      %p368 = scmp.ne.s32.totalorder %s357, %s358
      %p369 = scmp.eq.s32.totalorder %s30, 0
      %p370 = por %p368, %p369
      %p371 = scmp.ne.s32.totalorder %s357, %s358
      %p372 = scmp.eq.s32.totalorder %s31, 3
      %p373 = por %p371, %p372
      %p375 = scmp.ne.s32.totalorder %s358, %s374
      %p376 = scmp.eq.s32.totalorder %s31, 0
      %p377 = por %p375, %p376
      %s378 = ssub.s32 %s33, %s40
      %p379 = scmp.eq.s32.totalorder %s378, 0
      %s381 = sadd.s32 %s380, 1
      %s382 = scalar_select %p379, %s380, %s381
      %p385 = pneg %p379
      %p386 = scmp.eq.s32.totalorder %s25, 3
      %p387 = por %p385, %p386
      %p388 = scmp.ne.s32.totalorder %s380, %s383
      %p389 = scmp.eq.s32.totalorder %s25, 0
      %p390 = por %p388, %p389
      %p391 = scmp.ne.s32.totalorder %s380, %s383
      %p392 = scmp.eq.s32.totalorder %s30, 3
      %p393 = por %p391, %p392
      %p394 = scmp.ne.s32.totalorder %s383, %s384
      %p395 = scmp.eq.s32.totalorder %s30, 0
      %p396 = por %p394, %p395
      %p397 = scmp.ne.s32.totalorder %s383, %s384
      %p398 = scmp.eq.s32.totalorder %s31, 3
      %p399 = por %p397, %p398
      %p401 = scmp.ne.s32.totalorder %s384, %s400
      %p402 = scmp.eq.s32.totalorder %s31, 0
      %p403 = por %p401, %p402
      %s405 = sadd.s32 %s404, 1
      %p408 = scmp.eq.s32.totalorder %s25, 3
      %p409 = scmp.ne.s32.totalorder %s404, %s406
      %p410 = scmp.eq.s32.totalorder %s25, 0
      %p411 = por %p409, %p410
      %p412 = scmp.ne.s32.totalorder %s404, %s406
      %p413 = scmp.eq.s32.totalorder %s30, 3
      %p414 = por %p412, %p413
      %p415 = scmp.ne.s32.totalorder %s406, %s407
      %p416 = scmp.eq.s32.totalorder %s30, 0
      %p417 = por %p415, %p416
      %p418 = scmp.ne.s32.totalorder %s406, %s407
      %p419 = scmp.eq.s32.totalorder %s31, 3
      %p420 = por %p418, %p419
      %p422 = scmp.ne.s32.totalorder %s407, %s421
      %p423 = scmp.eq.s32.totalorder %s31, 0
      %p424 = por %p422, %p423
      %s426 = sadd.s32 %s425, 1
      %p429 = scmp.eq.s32.totalorder %s25, 3
      %p430 = scmp.ne.s32.totalorder %s425, %s427
      %p431 = scmp.eq.s32.totalorder %s25, 0
      %p432 = por %p430, %p431
      %p433 = scmp.ne.s32.totalorder %s425, %s427
      %p434 = scmp.eq.s32.totalorder %s30, 3
      %p435 = por %p433, %p434
      %p436 = scmp.ne.s32.totalorder %s427, %s428
      %p437 = scmp.eq.s32.totalorder %s30, 0
      %p438 = por %p436, %p437
      %p439 = scmp.ne.s32.totalorder %s427, %s428
      %p440 = scmp.eq.s32.totalorder %s31, 3
      %p441 = por %p439, %p440
      %p443 = scmp.ne.s32.totalorder %s428, %s442
      %p444 = scmp.eq.s32.totalorder %s31, 0
      %p445 = por %p443, %p444
      %s446 = ssub.s32 %s32, %s44
      %p447 = scmp.eq.s32.totalorder %s446, 0
      %s449 = sadd.s32 %s448, 1
      %s450 = scalar_select %p447, %s448, %s449
      %p453 = pneg %p447
      %p454 = scmp.eq.s32.totalorder %s25, 3
      %p455 = por %p453, %p454
      %p456 = scmp.ne.s32.totalorder %s448, %s451
      %p457 = scmp.eq.s32.totalorder %s25, 0
      %p458 = por %p456, %p457
      %p459 = scmp.ne.s32.totalorder %s448, %s451
      %p460 = scmp.eq.s32.totalorder %s30, 3
      %p461 = por %p459, %p460
      %p462 = scmp.ne.s32.totalorder %s451, %s452
      %p463 = scmp.eq.s32.totalorder %s30, 0
      %p464 = por %p462, %p463
      %p465 = scmp.ne.s32.totalorder %s451, %s452
      %p466 = scmp.eq.s32.totalorder %s31, 3
      %p467 = por %p465, %p466
      %p469 = scmp.ne.s32.totalorder %s452, %s468
      %p470 = scmp.eq.s32.totalorder %s31, 0
      %p471 = por %p469, %p470
      %p472 = scmp.le.s32.totalorder 1, %s25
      %p473 = scmp.lt.s32.totalorder %s25, 5
      %p474 = pnand %p472, %p473
      %p475 = pneg %p474
      // Predicated region
      $region9: #{self_mha_decoder_forward.1} parent=5 // pred_check
        _
      $region10: #{self_mha_decoder_forward.1} parent=5 // pred_check_branch
        %477 = sbr.rel (%p474) target = $region12
      $region11: #{self_mha_decoder_forward.1} parent=5 // pred_region
        %s478 = ssub.s32 %s25, 1
        // Predicated region
        $region13: #{self_mha_decoder_forward.1} parent=11 // pred_check
          %p479 = pneg %p84
        $region14: #{self_mha_decoder_forward.1} parent=11 // pred_check_branch
          %481 = sbr.rel (%p479) target = $region16
        $region15: #{self_mha_decoder_forward.1} parent=11 // pred_region
          _
        $region16: #{self_mha_decoder_forward.1} parent=11 // pred_fallthru
          _
        // Predicated region
        $region17: #{self_mha_decoder_forward.1} parent=11 // pred_check
          %p482 = pneg %p417
        $region18: #{self_mha_decoder_forward.1} parent=11 // pred_check_branch
          %484 = sbr.rel (%p482) target = $region20
        $region19: #{self_mha_decoder_forward.1} parent=11 // pred_region
          _
        $region20: #{self_mha_decoder_forward.1} parent=11 // pred_fallthru
          _
        // Predicated region
        $region21: #{self_mha_decoder_forward.1} parent=11 // pred_check
          %p485 = pneg %p438
        $region22: #{self_mha_decoder_forward.1} parent=11 // pred_check_branch
          %487 = sbr.rel (%p485) target = $region24
        $region23: #{self_mha_decoder_forward.1} parent=11 // pred_region
          _
        $region24: #{self_mha_decoder_forward.1} parent=11 // pred_fallthru
          _
      $region12: #{self_mha_decoder_forward.1} parent=5 // pred_fallthru
        _
      %p488 = scmp.lt.s32.totalorder %s25, 4
      // Predicated region
      $region25: #{self_mha_decoder_forward.1} parent=5 // pred_check
        %p489 = pneg %p488
      $region26: #{self_mha_decoder_forward.1} parent=5 // pred_check_branch
        %491 = sbr.rel (%p489) target = $region28
      $region27: #{self_mha_decoder_forward.1} parent=5 // pred_region
        // Predicated region
        $region29: #{self_mha_decoder_forward.1} parent=27 // pred_check
          %p492 = pneg %p57
        $region30: #{self_mha_decoder_forward.1} parent=27 // pred_check_branch
          %494 = sbr.rel (%p492) target = $region32
        $region31: #{self_mha_decoder_forward.1} parent=27 // pred_region
          %p495 = scmp.lt.s32.totalorder %s32, 1
          %s496 = scalar_select %p495, %s32, 1
          %s497 = smul.addr %s496, 8
          %s498 = scalar_lea.vmem %s0, %s497
        $region32: #{self_mha_decoder_forward.1} parent=27 // pred_fallthru
          _
        // Predicated region
        $region33: #{self_mha_decoder_forward.1} parent=27 // pred_check
          %p499 = pneg %p104
        $region34: #{self_mha_decoder_forward.1} parent=27 // pred_check_branch
          %501 = sbr.rel (%p499) target = $region36
        $region35: #{self_mha_decoder_forward.1} parent=27 // pred_region
          %p502 = scmp.lt.s32.totalorder %s33, 1
          %s503 = scalar_select %p502, %s33, 1
          %s504 = smul.addr %s503, 4
          %s505 = smul.addr %s504, 4
          %s506 = scalar_lea.vmem %s2, %s505
        $region36: #{self_mha_decoder_forward.1} parent=27 // pred_fallthru
          _
        // Predicated region
        $region37: #{self_mha_decoder_forward.1} parent=27 // pred_check
          %p507 = pneg %p130
        $region38: #{self_mha_decoder_forward.1} parent=27 // pred_check_branch
          %509 = sbr.rel (%p507) target = $region40
        $region39: #{self_mha_decoder_forward.1} parent=27 // pred_region
          %p510 = scmp.lt.s32.totalorder %s33, 1
          %s511 = scalar_select %p510, %s33, 1
          %s512 = scalar_lea.vmem %s3, %s511
        $region40: #{self_mha_decoder_forward.1} parent=27 // pred_fallthru
          _
        // Predicated region
        $region41: #{self_mha_decoder_forward.1} parent=27 // pred_check
          %p513 = pneg %p156
        $region42: #{self_mha_decoder_forward.1} parent=27 // pred_check_branch
          %515 = sbr.rel (%p513) target = $region44
        $region43: #{self_mha_decoder_forward.1} parent=27 // pred_region
          %p516 = scmp.lt.s32.totalorder %s33, 1
          %s517 = scalar_select %p516, %s33, 1
          %s518 = smul.addr %s517, 4
          %s519 = smul.addr %s518, 4
          %s520 = scalar_lea.vmem %s4, %s519
        $region44: #{self_mha_decoder_forward.1} parent=27 // pred_fallthru
          _
        // Predicated region
        $region45: #{self_mha_decoder_forward.1} parent=27 // pred_check
          %p521 = pneg %p182
        $region46: #{self_mha_decoder_forward.1} parent=27 // pred_check_branch
          %523 = sbr.rel (%p521) target = $region48
        $region47: #{self_mha_decoder_forward.1} parent=27 // pred_region
          %p524 = scmp.lt.s32.totalorder %s33, 1
          %s525 = scalar_select %p524, %s33, 1
          %s526 = scalar_lea.vmem %s5, %s525
        $region48: #{self_mha_decoder_forward.1} parent=27 // pred_fallthru
          _
        // Predicated region
        $region49: #{self_mha_decoder_forward.1} parent=27 // pred_check
          %p527 = pneg %p208
        $region50: #{self_mha_decoder_forward.1} parent=27 // pred_check_branch
          %529 = sbr.rel (%p527) target = $region52
        $region51: #{self_mha_decoder_forward.1} parent=27 // pred_region
          %p530 = scmp.lt.s32.totalorder %s33, 1
          %s531 = scalar_select %p530, %s33, 1
          %s532 = smul.addr %s531, 4
          %s533 = smul.addr %s532, 4
          %s534 = scalar_lea.vmem %s6, %s533
        $region52: #{self_mha_decoder_forward.1} parent=27 // pred_fallthru
          _
        // Predicated region
        $region53: #{self_mha_decoder_forward.1} parent=27 // pred_check
          %p535 = pneg %p234
        $region54: #{self_mha_decoder_forward.1} parent=27 // pred_check_branch
          %537 = sbr.rel (%p535) target = $region56
        $region55: #{self_mha_decoder_forward.1} parent=27 // pred_region
          %p538 = scmp.lt.s32.totalorder %s33, 1
          %s539 = scalar_select %p538, %s33, 1
          %s540 = scalar_lea.vmem %s7, %s539
        $region56: #{self_mha_decoder_forward.1} parent=27 // pred_fallthru
          _
        // Predicated region
        $region57: #{self_mha_decoder_forward.1} parent=27 // pred_check
          %p541 = pneg %p260
        $region58: #{self_mha_decoder_forward.1} parent=27 // pred_check_branch
          %543 = sbr.rel (%p541) target = $region60
        $region59: #{self_mha_decoder_forward.1} parent=27 // pred_region
          %p544 = scmp.lt.s32.totalorder %s33, 1
          %s545 = scalar_select %p544, %s33, 1
          %s546 = smul.addr %s545, 4
          %s547 = smul.addr %s546, 4
          %s548 = scalar_lea.vmem %s8, %s547
        $region60: #{self_mha_decoder_forward.1} parent=27 // pred_fallthru
          _
        // Predicated region
        $region61: #{self_mha_decoder_forward.1} parent=27 // pred_check
          %p549 = pneg %p286
        $region62: #{self_mha_decoder_forward.1} parent=27 // pred_check_branch
          %551 = sbr.rel (%p549) target = $region64
        $region63: #{self_mha_decoder_forward.1} parent=27 // pred_region
          %p552 = scmp.lt.s32.totalorder %s33, 1
          %s553 = scalar_select %p552, %s33, 1
          %s554 = scalar_lea.vmem %s9, %s553
        $region64: #{self_mha_decoder_forward.1} parent=27 // pred_fallthru
          _
        // Predicated region
        $region65: #{self_mha_decoder_forward.1} parent=27 // pred_check
          %p555 = pneg %p312
        $region66: #{self_mha_decoder_forward.1} parent=27 // pred_check_branch
          %557 = sbr.rel (%p555) target = $region68
        $region67: #{self_mha_decoder_forward.1} parent=27 // pred_region
          %p558 = scmp.lt.s32.totalorder %s33, 1
          %s559 = scalar_select %p558, %s33, 1
          %s560 = scalar_lea.vmem %s10, %s559
        $region68: #{self_mha_decoder_forward.1} parent=27 // pred_fallthru
          _
        // Predicated region
        $region69: #{self_mha_decoder_forward.1} parent=27 // pred_check
          %p561 = pneg %p338
        $region70: #{self_mha_decoder_forward.1} parent=27 // pred_check_branch
          %563 = sbr.rel (%p561) target = $region72
        $region71: #{self_mha_decoder_forward.1} parent=27 // pred_region
          %p564 = scmp.lt.s32.totalorder %s33, 1
          %s565 = scalar_select %p564, %s33, 1
          %s566 = scalar_lea.vmem %s11, %s565
        $region72: #{self_mha_decoder_forward.1} parent=27 // pred_fallthru
          _
        // Predicated region
        $region73: #{self_mha_decoder_forward.1} parent=27 // pred_check
          %p567 = pneg %p364
        $region74: #{self_mha_decoder_forward.1} parent=27 // pred_check_branch
          %569 = sbr.rel (%p567) target = $region76
        $region75: #{self_mha_decoder_forward.1} parent=27 // pred_region
          %p570 = scmp.lt.s32.totalorder %s33, 1
          %s571 = scalar_select %p570, %s33, 1
          %s572 = scalar_lea.vmem %s12, %s571
        $region76: #{self_mha_decoder_forward.1} parent=27 // pred_fallthru
          _
        // Predicated region
        $region77: #{self_mha_decoder_forward.1} parent=27 // pred_check
          %p573 = pneg %p390
        $region78: #{self_mha_decoder_forward.1} parent=27 // pred_check_branch
          %575 = sbr.rel (%p573) target = $region80
        $region79: #{self_mha_decoder_forward.1} parent=27 // pred_region
          %p576 = scmp.lt.s32.totalorder %s33, 1
          %s577 = scalar_select %p576, %s33, 1
          %s578 = scalar_lea.vmem %s13, %s577
        $region80: #{self_mha_decoder_forward.1} parent=27 // pred_fallthru
          _
      $region28: #{self_mha_decoder_forward.1} parent=5 // pred_fallthru
        _
      %p579 = scmp.le.s32.totalorder 1, %s25
      %p580 = scmp.lt.s32.totalorder %s25, 5
      %p581 = pnand %p579, %p580
      %p582 = pneg %p581
      // Predicated region
      $region81: #{self_mha_decoder_forward.1} parent=5 // pred_check
        _
      $region82: #{self_mha_decoder_forward.1} parent=5 // pred_check_branch
        %584 = sbr.rel (%p581) target = $region84
      $region83: #{self_mha_decoder_forward.1} parent=5 // pred_region
        %s585 = ssub.s32 %s25, 1
        %p586 = scmp.lt.s32.totalorder %s34, 1
        %s587 = scalar_select %p586, %s34, 1
        %s588 = smul.addr %s587, 8
        %s589 = scalar_lea.vmem %s0, %s588
        %p590 = pneg %p63
        %p591 = pneg %p60
        %p592 = pneg %p84
        %p593 = pneg %p81
        %p594 = scmp.lt.s32.totalorder %s35, 1
        %s595 = scalar_select %p594, %s35, 1
        %s596 = smul.addr %s595, 4
        %s597 = smul.addr %s596, 4
        %s598 = scalar_lea.vmem %s2, %s597
        %p599 = pneg %p110
        %p600 = pneg %p107
        %p601 = scmp.lt.s32.totalorder %s35, 1
        %s602 = scalar_select %p601, %s35, 1
        %s603 = scalar_lea.vmem %s3, %s602
        %p604 = pneg %p136
        %p605 = pneg %p133
        %p606 = scmp.lt.s32.totalorder %s35, 1
        %s607 = scalar_select %p606, %s35, 1
        %s608 = smul.addr %s607, 4
        %s609 = smul.addr %s608, 4
        %s610 = scalar_lea.vmem %s4, %s609
        %p611 = pneg %p162
        %p612 = pneg %p159
        %p613 = scmp.lt.s32.totalorder %s35, 1
        %s614 = scalar_select %p613, %s35, 1
        %s615 = scalar_lea.vmem %s5, %s614
        %p616 = pneg %p188
        %p617 = pneg %p185
        %p618 = scmp.lt.s32.totalorder %s35, 1
        %s619 = scalar_select %p618, %s35, 1
        %s620 = smul.addr %s619, 4
        %s621 = smul.addr %s620, 4
        %s622 = scalar_lea.vmem %s6, %s621
        %p623 = pneg %p214
        %p624 = pneg %p211
        %p625 = scmp.lt.s32.totalorder %s35, 1
        %s626 = scalar_select %p625, %s35, 1
        %s627 = scalar_lea.vmem %s7, %s626
        %p628 = pneg %p240
        %p629 = pneg %p237
        %p630 = scmp.lt.s32.totalorder %s35, 1
        %s631 = scalar_select %p630, %s35, 1
        %s632 = smul.addr %s631, 4
        %s633 = smul.addr %s632, 4
        %s634 = scalar_lea.vmem %s8, %s633
        %p635 = pneg %p266
        %p636 = pneg %p263
        %p637 = scmp.lt.s32.totalorder %s35, 1
        %s638 = scalar_select %p637, %s35, 1
        %s639 = scalar_lea.vmem %s9, %s638
        %p640 = pneg %p292
        %p641 = pneg %p289
        %p642 = scmp.lt.s32.totalorder %s35, 1
        %s643 = scalar_select %p642, %s35, 1
        %s644 = scalar_lea.vmem %s10, %s643
        %p645 = pneg %p318
        %p646 = pneg %p315
        %p647 = scmp.lt.s32.totalorder %s35, 1
        %s648 = scalar_select %p647, %s35, 1
        %s649 = scalar_lea.vmem %s11, %s648
        %p650 = pneg %p344
        %p651 = pneg %p341
        %p652 = scmp.lt.s32.totalorder %s35, 1
        %s653 = scalar_select %p652, %s35, 1
        %s654 = scalar_lea.vmem %s12, %s653
        %p655 = pneg %p370
        %p656 = pneg %p367
        %p657 = scmp.lt.s32.totalorder %s35, 1
        %s658 = scalar_select %p657, %s35, 1
        %s659 = scalar_lea.vmem %s13, %s658
        %p660 = pneg %p396
        %p661 = pneg %p393
        %p662 = pneg %p417
        %p663 = pneg %p414
        %p664 = pneg %p438
        %p665 = pneg %p435
        %p666 = pneg %p464
        %p667 = pneg %p461
        %s668 = sand.u32 %s451, 1
        %s669 = scalar_lea.sflag [#allocation5], %s668
        %s670 = sand.u32 %s451, 1
        %s671 = smul.addr %s670, 8
        %s672 = scalar_lea.vmem [#allocation4], %s671
        %p673 = scmp.lt.s32.totalorder %s34, 1
        %s674 = scalar_select %p673, %s34, 1
        %s675 = smul.addr %s674, 8
        %s676 = scalar_lea.vmem %s0, %s675
        %p677 = scmp.lt.s32.totalorder %s35, 1
        %s678 = scalar_select %p677, %s35, 1
        %s679 = smul.addr %s678, 4
        %s680 = smul.addr %s679, 4
        %s681 = scalar_lea.vmem %s2, %s680
        %p682 = scmp.lt.s32.totalorder %s35, 1
        %s683 = scalar_select %p682, %s35, 1
        %s684 = scalar_lea.vmem %s3, %s683
        %p685 = scmp.lt.s32.totalorder %s35, 1
        %s686 = scalar_select %p685, %s35, 1
        %s687 = smul.addr %s686, 4
        %s688 = smul.addr %s687, 4
        %s689 = scalar_lea.vmem %s4, %s688
        %p690 = scmp.lt.s32.totalorder %s35, 1
        %s691 = scalar_select %p690, %s35, 1
        %s692 = scalar_lea.vmem %s5, %s691
        %p693 = scmp.lt.s32.totalorder %s35, 1
        %s694 = scalar_select %p693, %s35, 1
        %s695 = smul.addr %s694, 4
        %s696 = smul.addr %s695, 4
        %s697 = scalar_lea.vmem %s6, %s696
        %p698 = scmp.lt.s32.totalorder %s35, 1
        %s699 = scalar_select %p698, %s35, 1
        %s700 = scalar_lea.vmem %s7, %s699
        %p701 = scmp.lt.s32.totalorder %s35, 1
        %s702 = scalar_select %p701, %s35, 1
        %s703 = smul.addr %s702, 4
        %s704 = smul.addr %s703, 4
        %s705 = scalar_lea.vmem %s8, %s704
        %p706 = scmp.lt.s32.totalorder %s35, 1
        %s707 = scalar_select %p706, %s35, 1
        %s708 = scalar_lea.vmem %s9, %s707
        %p709 = scmp.lt.s32.totalorder %s35, 1
        %s710 = scalar_select %p709, %s35, 1
        %s711 = scalar_lea.vmem %s10, %s710
        %p712 = scmp.lt.s32.totalorder %s35, 1
        %s713 = scalar_select %p712, %s35, 1
        %s714 = scalar_lea.vmem %s11, %s713
        %p715 = scmp.lt.s32.totalorder %s35, 1
        %s716 = scalar_select %p715, %s35, 1
        %s717 = scalar_lea.vmem %s12, %s716
        %p718 = scmp.lt.s32.totalorder %s35, 1
        %s719 = scalar_select %p718, %s35, 1
        %s720 = scalar_lea.vmem %s13, %s719
        %p722 = scmp.eq.s32.totalorder %s35, 0
        // Predicated region
        $region85: #{self_mha_decoder_forward.1} parent=83 // pred_check
          %p723 = pneg %p722
        $region86: #{self_mha_decoder_forward.1} parent=83 // pred_check_branch
          %725 = sbr.rel (%p723) target = $region88
        $region87: #{self_mha_decoder_forward.1} parent=83 // pred_region
          %v726 = vld [vmem:[%s676] sm:$0xff]
          %v727 = vld [vmem:[%s1] sm:$0xff]
          %v728 = vadd.f32 %v726, %v727
          %vm729 = vcmask 261120
          %730 = vst.msk [vmem:[#allocation2] sm:$0xff] %vm729, %v728
        $region88: #{self_mha_decoder_forward.1} parent=83 // pred_fallthru
          _
        %v731 = vld [vmem:[#allocation2] sm:$0xff]
        %v732 = vpack.c.bf16 %v731, %v731
        %v733 = vld [vmem:[%s681] sm:$0xf]
        %v734 = vld [vmem:[%s681 + $0x4] sm:$0xf]
        %v735 = vld [vmem:[%s681 + $0x8] sm:$0xf]
        %v736 = vld [vmem:[%s681 + $0xc] sm:$0xf]
        %v737 = vld [vmem:[%s684] sm:$0x1]
        %v739 = vperm.slane %v737, 0
        %v745 = vunpack.c.l.b16 %v733
        %v746 = vunpack.c.l.b16 %v734
        %v747 = vunpack.c.l.b16 %v735
        %v748 = vunpack.c.l.b16 %v736
        %v749 = vpack.c.b16 %v746, %v745
        %v750 = vpack.c.b16 %v748, %v747
        %vm753 = vcmask 261120
        %v755 = vsel %vm753, %v732, 0
        %757 = vmatpush.bf16.msra.mxu0 0
        %758 = vmatpush.bf16.msra.mxu0 0
        %759 = vmatpush.bf16.msra.mxu0 0
        %760 = vmatpush.bf16.msra.mxu0 0
        %761 = vmatpush.bf16.msra.mxu0 0
        %762 = vmatpush.bf16.msra.mxu0 0
        %763 = vmatpush.bf16.msra.mxu0 %v750
        %764 = vmatpush.bf16.msra.mxu0 %v749
        %765 = vmatmul.bf16.gmra.mxu0 %v755
        %v766 = vpop.f32.mrf.mxu0
        %v767 = vadd.f32 %v739, %v766
        %v768 = vpop.f32.mrf.mxu0
        %769 = vdwg.mxu0
        %v770 = vlaneseq
        %v771 = vshrl.u32 %v770, 7
        %v772 = vlaneseq
        %v773 = vand.u32 %v772, 127
        %vm774 = vcmp.le.s32.totalorder %v773, %v771
        %v775 = vpack.c.bf16 %v767, %v767
        %v777 = vunpack.c.l.b16 %v775
        %v778 = vpack.c.b16 %v777, %v777
        %779 = vrot.lane.b32.xlu0 %v778, 96
        %v780 = vpop.permute.xlu0 %779
        %vm781 = vcmask 64512
        %v783 = vsel %vm781, %v775, 0
        %v786 = vsel %vm781, %v780, 0
        %788 = vmatpush.bf16.xpose.msra.mxu0 0
        %789 = vmatpush.bf16.xpose.msra.mxu0 0
        %790 = vmatpush.bf16.xpose.msra.mxu0 0
        %791 = vmatpush.bf16.xpose.msra.mxu0 0
        %792 = vmatpush.bf16.xpose.msra.mxu0 0
        %793 = vmatpush.bf16.xpose.msra.mxu0 0
        %794 = vmatpush.bf16.xpose.msra.mxu0 0
        %795 = vmatpush.bf16.xpose.msra.mxu0 %v786
        %796 = vmatmul.bf16.gmra.mxu0 %v783
        %v797 = vpop.f32.mrf.mxu0
        %v798 = vadd.f32 0.0, %v797
        %v799 = vpop.f32.mrf.mxu0
        %800 = vdwg.mxu0
        %v801 = vsel %vm774, %v798, -1e+30
        %v802 = vsel %vm781, %v801, -inf
        %803 = vmax.xlane.f32.xlu0 %v802
        %v804 = vpop.xlane.xlu0 %803
        %v805 = vsub.f32 %v801, %v804
        %v806 = vmul.f32 %v805, 1.442695
        %v807 = vpow.pop %v806
        %v808 = vsel %vm781, %v807, 0.0
        %809 = vadd.xlane.f32.xlu0 %v808
        %v810 = vpop.xlane.xlu0 %809
        %v811 = vrcp.pop %v810
        %v812 = vmul.f32 %v807, %v811
        %v813 = vpack.c.bf16 %v812, %v812
        %814 = vrot.lane.b32.xlu0 %v778, 64
        %v815 = vpop.permute.xlu0 %814
        %v817 = vsel %vm781, %v813, 0
        %vm819 = vcmask 1043456
        %v821 = vsel %vm819, %v815, 0
        %823 = vmatpush.bf16.msra.mxu0 0
        %824 = vmatpush.bf16.msra.mxu0 0
        %825 = vmatpush.bf16.msra.mxu0 0
        %826 = vmatpush.bf16.msra.mxu0 0
        %827 = vmatpush.bf16.msra.mxu0 0
        %828 = vmatpush.bf16.msra.mxu0 0
        %829 = vmatpush.bf16.msra.mxu0 0
        %830 = vmatpush.bf16.msra.mxu0 %v821
        %831 = vmatmul.bf16.gmra.mxu0 %v817
        %v832 = vpop.f32.mrf.mxu0
        %v833 = vadd.f32 0.0, %v832
        %v834 = vpop.f32.mrf.mxu0
        %835 = vdwg.mxu0
        %v836 = vpack.c.bf16 %v833, %v833
        %vm837 = vcmask 60416
        %838 = vst.msk [vmem:[#allocation3] sm:$0xf] %vm837, %v836
        %839 = vrot.lane.b32.xlu0 %v778, 120
        %v840 = vpop.permute.xlu0 %839
        %841 = vrot.lane.b32.xlu0 %v778, 88
        %v842 = vpop.permute.xlu0 %841
        %v844 = vsel %vm781, %v840, 0
        %v847 = vsel %vm781, %v842, 0
        %849 = vmatpush.bf16.xpose.msra.mxu0 0
        %850 = vmatpush.bf16.xpose.msra.mxu0 0
        %851 = vmatpush.bf16.xpose.msra.mxu0 0
        %852 = vmatpush.bf16.xpose.msra.mxu0 0
        %853 = vmatpush.bf16.xpose.msra.mxu0 0
        %854 = vmatpush.bf16.xpose.msra.mxu0 0
        %855 = vmatpush.bf16.xpose.msra.mxu0 0
        %856 = vmatpush.bf16.xpose.msra.mxu0 %v847
        %857 = vmatmul.bf16.gmra.mxu0 %v844
        %v858 = vpop.f32.mrf.mxu0
        %v859 = vadd.f32 0.0, %v858
        %v860 = vpop.f32.mrf.mxu0
        %861 = vdwg.mxu0
        %v862 = vsel %vm774, %v859, -1e+30
        %v863 = vsel %vm781, %v862, -inf
        %864 = vmax.xlane.f32.xlu0 %v863
        %v865 = vpop.xlane.xlu0 %864
        %v866 = vsub.f32 %v862, %v865
        %v867 = vmul.f32 %v866, 1.442695
        %v868 = vpow.pop %v867
        %v869 = vsel %vm781, %v868, 0.0
        %870 = vadd.xlane.f32.xlu0 %v869
        %v871 = vpop.xlane.xlu0 %870
        %v872 = vrcp.pop %v871
        %v873 = vmul.f32 %v868, %v872
        %v874 = vpack.c.bf16 %v873, %v873
        %875 = vrot.lane.b32.xlu0 %v778, 56
        %v876 = vpop.permute.xlu0 %875
        %v878 = vsel %vm781, %v874, 0
        %v881 = vsel %vm819, %v876, 0
        %883 = vmatpush.bf16.msra.mxu0 0
        %884 = vmatpush.bf16.msra.mxu0 0
        %885 = vmatpush.bf16.msra.mxu0 0
        %886 = vmatpush.bf16.msra.mxu0 0
        %887 = vmatpush.bf16.msra.mxu0 0
        %888 = vmatpush.bf16.msra.mxu0 0
        %889 = vmatpush.bf16.msra.mxu0 0
        %890 = vmatpush.bf16.msra.mxu0 %v881
        %891 = vmatmul.bf16.gmra.mxu0 %v878
        %v892 = vpop.f32.mrf.mxu0
        %v893 = vadd.f32 0.0, %v892
        %v894 = vpop.f32.mrf.mxu0
        %895 = vdwg.mxu0
        %v896 = vpack.c.bf16 %v893, %v893
        %898 = vrot.lane.b32.xlu0 %v896, 8
        %v899 = vpop.permute.xlu0 %898
        %vm901 = vcmask 126016
        %902 = vst.msk [vmem:[#allocation3] sm:$0xf] %vm901, %v899
        %903 = vrot.lane.b32.xlu0 %v778, 112
        %v904 = vpop.permute.xlu0 %903
        %905 = vrot.lane.b32.xlu0 %v778, 80
        %v906 = vpop.permute.xlu0 %905
        %v908 = vsel %vm781, %v904, 0
        %v911 = vsel %vm781, %v906, 0
        %913 = vmatpush.bf16.xpose.msra.mxu0 0
        %914 = vmatpush.bf16.xpose.msra.mxu0 0
        %915 = vmatpush.bf16.xpose.msra.mxu0 0
        %916 = vmatpush.bf16.xpose.msra.mxu0 0
        %917 = vmatpush.bf16.xpose.msra.mxu0 0
        %918 = vmatpush.bf16.xpose.msra.mxu0 0
        %919 = vmatpush.bf16.xpose.msra.mxu0 0
        %920 = vmatpush.bf16.xpose.msra.mxu0 %v911
        %921 = vmatmul.bf16.gmra.mxu0 %v908
        %v922 = vpop.f32.mrf.mxu0
        %v923 = vadd.f32 0.0, %v922
        %v924 = vpop.f32.mrf.mxu0
        %925 = vdwg.mxu0
        %v926 = vsel %vm774, %v923, -1e+30
        %v927 = vsel %vm781, %v926, -inf
        %928 = vmax.xlane.f32.xlu0 %v927
        %v929 = vpop.xlane.xlu0 %928
        %v930 = vsub.f32 %v926, %v929
        %v931 = vmul.f32 %v930, 1.442695
        %v932 = vpow.pop %v931
        %v933 = vsel %vm781, %v932, 0.0
        %934 = vadd.xlane.f32.xlu0 %v933
        %v935 = vpop.xlane.xlu0 %934
        %v936 = vrcp.pop %v935
        %v937 = vmul.f32 %v932, %v936
        %v938 = vpack.c.bf16 %v937, %v937
        %939 = vrot.lane.b32.xlu0 %v778, 48
        %v940 = vpop.permute.xlu0 %939
        %v942 = vsel %vm781, %v938, 0
        %v945 = vsel %vm819, %v940, 0
        %947 = vmatpush.bf16.msra.mxu0 0
        %948 = vmatpush.bf16.msra.mxu0 0
        %949 = vmatpush.bf16.msra.mxu0 0
        %950 = vmatpush.bf16.msra.mxu0 0
        %951 = vmatpush.bf16.msra.mxu0 0
        %952 = vmatpush.bf16.msra.mxu0 0
        %953 = vmatpush.bf16.msra.mxu0 0
        %954 = vmatpush.bf16.msra.mxu0 %v945
        %955 = vmatmul.bf16.gmra.mxu0 %v942
        %v956 = vpop.f32.mrf.mxu0
        %v957 = vadd.f32 0.0, %v956
        %v958 = vpop.f32.mrf.mxu0
        %959 = vdwg.mxu0
        %v960 = vpack.c.bf16 %v957, %v957
        %962 = vrot.lane.b32.xlu0 %v960, 16
        %v963 = vpop.permute.xlu0 %962
        %vm965 = vcmask 191616
        %966 = vst.msk [vmem:[#allocation3] sm:$0xf] %vm965, %v963
        %967 = vrot.lane.b32.xlu0 %v778, 104
        %v968 = vpop.permute.xlu0 %967
        %969 = vrot.lane.b32.xlu0 %v778, 72
        %v970 = vpop.permute.xlu0 %969
        %v972 = vsel %vm781, %v968, 0
        %v975 = vsel %vm781, %v970, 0
        %977 = vmatpush.bf16.xpose.msra.mxu0 0
        %978 = vmatpush.bf16.xpose.msra.mxu0 0
        %979 = vmatpush.bf16.xpose.msra.mxu0 0
        %980 = vmatpush.bf16.xpose.msra.mxu0 0
        %981 = vmatpush.bf16.xpose.msra.mxu0 0
        %982 = vmatpush.bf16.xpose.msra.mxu0 0
        %983 = vmatpush.bf16.xpose.msra.mxu0 0
        %984 = vmatpush.bf16.xpose.msra.mxu0 %v975
        %985 = vmatmul.bf16.gmra.mxu0 %v972
        %v986 = vpop.f32.mrf.mxu0
        %v987 = vadd.f32 0.0, %v986
        %v988 = vpop.f32.mrf.mxu0
        %989 = vdwg.mxu0
        %v990 = vsel %vm774, %v987, -1e+30
        %v991 = vsel %vm781, %v990, -inf
        %992 = vmax.xlane.f32.xlu0 %v991
        %v993 = vpop.xlane.xlu0 %992
        %v994 = vsub.f32 %v990, %v993
        %v995 = vmul.f32 %v994, 1.442695
        %v996 = vpow.pop %v995
        %v997 = vsel %vm781, %v996, 0.0
        %998 = vadd.xlane.f32.xlu0 %v997
        %v999 = vpop.xlane.xlu0 %998
        %v1000 = vrcp.pop %v999
        %v1001 = vmul.f32 %v996, %v1000
        %v1002 = vpack.c.bf16 %v1001, %v1001
        %1003 = vrot.lane.b32.xlu0 %v778, 40
        %v1004 = vpop.permute.xlu0 %1003
        %v1006 = vsel %vm781, %v1002, 0
        %v1009 = vsel %vm819, %v1004, 0
        %1011 = vmatpush.bf16.msra.mxu0 0
        %1012 = vmatpush.bf16.msra.mxu0 0
        %1013 = vmatpush.bf16.msra.mxu0 0
        %1014 = vmatpush.bf16.msra.mxu0 0
        %1015 = vmatpush.bf16.msra.mxu0 0
        %1016 = vmatpush.bf16.msra.mxu0 0
        %1017 = vmatpush.bf16.msra.mxu0 0
        %1018 = vmatpush.bf16.msra.mxu0 %v1009
        %1019 = vmatmul.bf16.gmra.mxu0 %v1006
        %v1020 = vpop.f32.mrf.mxu0
        %v1021 = vadd.f32 0.0, %v1020
        %v1022 = vpop.f32.mrf.mxu0
        %1023 = vdwg.mxu0
        %v1024 = vpack.c.bf16 %v1021, %v1021
        %1026 = vrot.lane.b32.xlu0 %v1024, 24
        %v1027 = vpop.permute.xlu0 %1026
        %vm1029 = vcmask 257216
        %1030 = vst.msk [vmem:[#allocation3] sm:$0xf] %vm1029, %v1027
        %v1031 = vld [vmem:[#allocation3] sm:$0xf]
        %v1032 = vld [vmem:[%s689] sm:$0xf]
        %v1033 = vld [vmem:[%s689 + $0x4] sm:$0xf]
        %v1034 = vld [vmem:[%s689 + $0x8] sm:$0xf]
        %v1035 = vld [vmem:[%s689 + $0xc] sm:$0xf]
        %v1036 = vld [vmem:[%s692] sm:$0x1]
        %v1038 = vperm.slane %v1036, 0
        %v1044 = vunpack.c.l.b16 %v1032
        %v1045 = vunpack.c.l.b16 %v1033
        %v1046 = vunpack.c.l.b16 %v1034
        %v1047 = vunpack.c.l.b16 %v1035
        %v1048 = vpack.c.b16 %v1045, %v1044
        %v1049 = vpack.c.b16 %v1047, %v1046
        %v1053 = vsel %vm753, %v1031, 0
        %1055 = vmatpush.bf16.msra.mxu0 0
        %1056 = vmatpush.bf16.msra.mxu0 0
        %1057 = vmatpush.bf16.msra.mxu0 0
        %1058 = vmatpush.bf16.msra.mxu0 0
        %1059 = vmatpush.bf16.msra.mxu0 0
        %1060 = vmatpush.bf16.msra.mxu0 0
        %1061 = vmatpush.bf16.msra.mxu0 %v1049
        %1062 = vmatpush.bf16.msra.mxu0 %v1048
        %1063 = vmatmul.bf16.gmra.mxu0 %v1053
        %v1064 = vpop.f32.mrf.mxu0
        %v1065 = vadd.f32 %v1038, %v1064
        %v1066 = vpop.f32.mrf.mxu0
        %1067 = vdwg.mxu0
        %v1068 = vadd.f32 %v731, %v1065
        %v1069 = vld [vmem:[%s711] sm:$0x1]
        %v1070 = vld [vmem:[%s714] sm:$0x1]
        %v1071 = vsel %vm753, %v1068, 0.0
        %1072 = vadd.xlane.f32.xlu0 %v1071
        %v1073 = vpop.xlane.xlu0 %1072
        %v1074 = vrcp.pop 32.0
        %v1075 = vmul.f32 32.0, %v1074
        %v1076 = vsub.f32 1.0, %v1075
        %v1077 = vmul.f32 %v1074, %v1076
        %v1078 = vadd.f32 %v1074, %v1077
        %vm1079 = vweird.f32 %v1074
        %v1080 = vsel %vm1079, %v1074, %v1078
        %v1081 = vmul.f32 %v1073, %v1080
        %v1082 = vsub.f32 %v1068, %v1081
        %v1083 = vmul.f32 %v1082, %v1082
        %v1084 = vsel %vm753, %v1083, 0.0
        %1085 = vadd.xlane.f32.xlu0 %v1084
        %v1086 = vpop.xlane.xlu0 %1085
        %v1087 = vmul.f32 %v1086, %v1080
        %v1088 = vadd.f32 %v1087, 1e-05
        %v1089 = vrsqrt.pop %v1088
        %v1090 = vmul.f32 %v1089, %v1088
        %v1091 = vmul.f32 %v1090, %v1089
        %v1092 = vmul.f32 0.5, %v1091
        %v1093 = vsub.f32 1.5, %v1092
        %v1094 = vmul.f32 %v1089, %v1093
        %vm1095 = vweird.f32 %v1088
        %vm1096 = vweird.f32 %v1089
        %vm1097 = vmor %vm1095, %vm1096
        %v1098 = vsel %vm1097, %v1089, %v1094
        %v1099 = vmul.f32 %v1082, %v1098
        %v1101 = vperm.slane %v1069, 0
        %v1103 = vmul.f32 %v1099, %v1101
        %v1105 = vperm.slane %v1070, 0
        %v1107 = vadd.f32 %v1103, %v1105
        %v1108 = vpack.c.bf16 %v1107, %v1107
        %v1109 = vld [vmem:[%s697] sm:$0xf]
        %v1110 = vld [vmem:[%s697 + $0x4] sm:$0xf]
        %v1111 = vld [vmem:[%s697 + $0x8] sm:$0xf]
        %v1112 = vld [vmem:[%s697 + $0xc] sm:$0xf]
        %v1113 = vld [vmem:[%s700] sm:$0x1]
        %v1115 = vperm.slane %v1113, 0
        %v1121 = vunpack.c.l.b16 %v1109
        %v1122 = vunpack.c.l.b16 %v1110
        %v1123 = vunpack.c.l.b16 %v1111
        %v1124 = vunpack.c.l.b16 %v1112
        %v1125 = vpack.c.b16 %v1122, %v1121
        %v1126 = vpack.c.b16 %v1124, %v1123
        %v1130 = vsel %vm753, %v1108, 0
        %1132 = vmatpush.bf16.msra.mxu0 0
        %1133 = vmatpush.bf16.msra.mxu0 0
        %1134 = vmatpush.bf16.msra.mxu0 0
        %1135 = vmatpush.bf16.msra.mxu0 0
        %1136 = vmatpush.bf16.msra.mxu0 0
        %1137 = vmatpush.bf16.msra.mxu0 0
        %1138 = vmatpush.bf16.msra.mxu0 %v1126
        %1139 = vmatpush.bf16.msra.mxu0 %v1125
        %1140 = vmatmul.bf16.gmra.mxu0 %v1130
        %v1141 = vpop.f32.mrf.mxu0
        %v1142 = vadd.f32 %v1115, %v1141
        %v1143 = vpop.f32.mrf.mxu0
        %1144 = vdwg.mxu0
        %v1145 = vmax.f32 %v1142, 0.0
        %v1146 = vpack.c.bf16 %v1145, %v1145
        %v1147 = vld [vmem:[%s705] sm:$0xf]
        %v1148 = vld [vmem:[%s705 + $0x4] sm:$0xf]
        %v1149 = vld [vmem:[%s705 + $0x8] sm:$0xf]
        %v1150 = vld [vmem:[%s705 + $0xc] sm:$0xf]
        %v1151 = vld [vmem:[%s708] sm:$0x1]
        %v1153 = vperm.slane %v1151, 0
        %v1159 = vunpack.c.l.b16 %v1147
        %v1160 = vunpack.c.l.b16 %v1148
        %v1161 = vunpack.c.l.b16 %v1149
        %v1162 = vunpack.c.l.b16 %v1150
        %v1163 = vpack.c.b16 %v1160, %v1159
        %v1164 = vpack.c.b16 %v1162, %v1161
        %v1168 = vsel %vm753, %v1146, 0
        %1170 = vmatpush.bf16.msra.mxu0 0
        %1171 = vmatpush.bf16.msra.mxu0 0
        %1172 = vmatpush.bf16.msra.mxu0 0
        %1173 = vmatpush.bf16.msra.mxu0 0
        %1174 = vmatpush.bf16.msra.mxu0 0
        %1175 = vmatpush.bf16.msra.mxu0 0
        %1176 = vmatpush.bf16.msra.mxu0 %v1164
        %1177 = vmatpush.bf16.msra.mxu0 %v1163
        %1178 = vmatmul.bf16.gmra.mxu0 %v1168
        %v1179 = vpop.f32.mrf.mxu0
        %v1180 = vadd.f32 %v1153, %v1179
        %v1181 = vpop.f32.mrf.mxu0
        %1182 = vdwg.mxu0
        %v1183 = vadd.f32 %v1107, %v1180
        %v1184 = vld [vmem:[%s717] sm:$0x1]
        %v1185 = vld [vmem:[%s720] sm:$0x1]
        %v1186 = vsel %vm753, %v1183, 0.0
        %1187 = vadd.xlane.f32.xlu0 %v1186
        %v1188 = vpop.xlane.xlu0 %1187
        %v1189 = vmul.f32 %v1188, %v1080
        %v1190 = vsub.f32 %v1183, %v1189
        %v1191 = vmul.f32 %v1190, %v1190
        %v1192 = vsel %vm753, %v1191, 0.0
        %1193 = vadd.xlane.f32.xlu0 %v1192
        %v1194 = vpop.xlane.xlu0 %1193
        %v1195 = vmul.f32 %v1194, %v1080
        %v1196 = vadd.f32 %v1195, 1e-05
        %v1197 = vrsqrt.pop %v1196
        %v1198 = vmul.f32 %v1197, %v1196
        %v1199 = vmul.f32 %v1198, %v1197
        %v1200 = vmul.f32 0.5, %v1199
        %v1201 = vsub.f32 1.5, %v1200
        %v1202 = vmul.f32 %v1197, %v1201
        %vm1203 = vweird.f32 %v1196
        %vm1204 = vweird.f32 %v1197
        %vm1205 = vmor %vm1203, %vm1204
        %v1206 = vsel %vm1205, %v1197, %v1202
        %v1207 = vmul.f32 %v1190, %v1206
        %v1209 = vperm.slane %v1184, 0
        %v1211 = vmul.f32 %v1207, %v1209
        %v1213 = vperm.slane %v1185, 0
        %v1215 = vadd.f32 %v1211, %v1213
        %1216 = vst.msk [vmem:[#allocation2] sm:$0xff] %vm753, %v1215
        %p1217 = scmp.eq.s32.totalorder %s35, 1
        // Predicated region
        $region89: #{self_mha_decoder_forward.1} parent=83 // pred_check
          %p1218 = pneg %p1217
        $region90: #{self_mha_decoder_forward.1} parent=83 // pred_check_branch
          %1220 = sbr.rel (%p1218) target = $region92
        $region91: #{self_mha_decoder_forward.1} parent=83 // pred_region
          %v1221 = vpack.c.bf16 %v1215, %v1215
          %v1222 = vld [vmem:[%s14] sm:$0xf]
          %v1223 = vld [vmem:[%s14 + $0x4] sm:$0xf]
          %v1224 = vld [vmem:[%s14 + $0x8] sm:$0xf]
          %v1225 = vld [vmem:[%s14 + $0xc] sm:$0xf]
          %v1226 = vld [vmem:[%s15] sm:$0x1]
          %v1228 = vperm.slane %v1226, 0
          %v1234 = vunpack.c.l.b16 %v1222
          %v1235 = vunpack.c.l.b16 %v1223
          %v1236 = vunpack.c.l.b16 %v1224
          %v1237 = vunpack.c.l.b16 %v1225
          %v1238 = vpack.c.b16 %v1235, %v1234
          %v1239 = vpack.c.b16 %v1237, %v1236
          %v1243 = vsel %vm753, %v1221, 0
          %1245 = vmatpush.bf16.msra.mxu0 0
          %1246 = vmatpush.bf16.msra.mxu0 0
          %1247 = vmatpush.bf16.msra.mxu0 0
          %1248 = vmatpush.bf16.msra.mxu0 0
          %1249 = vmatpush.bf16.msra.mxu0 0
          %1250 = vmatpush.bf16.msra.mxu0 0
          %1251 = vmatpush.bf16.msra.mxu0 %v1239
          %1252 = vmatpush.bf16.msra.mxu0 %v1238
          %1253 = vmatmul.bf16.gmra.mxu0 %v1243
          %v1254 = vpop.f32.mrf.mxu0
          %v1255 = vadd.f32 %v1228, %v1254
          %v1256 = vpop.f32.mrf.mxu0
          %1257 = vdwg.mxu0
          %1258 = vmax.xlane.f32.xlu0 %v1255
          %v1259 = vpop.xlane.xlu0 %1258
          %v1260 = vsub.f32 %v1255, %v1259
          %v1261 = vmul.f32 %v1260, 1.442695
          %v1262 = vpow.pop %v1261
          %1263 = vadd.xlane.f32.xlu0 %v1262
          %v1264 = vpop.xlane.xlu0 %1263
          %v1265 = vlog2.pop %v1264
          %v1266 = vmul.f32 %v1265, 0.6931472
          %v1267 = vadd.f32 %v1259, %v1266
          %v1268 = vsub.f32 %v1255, %v1267
          %1269 = vst [vmem:[%s672] sm:$0xff] %v1268
        $region92: #{self_mha_decoder_forward.1} parent=83 // pred_fallthru
          _
        %s1270 = sand.u32 %s451, 1
        %s1271 = scalar_lea.sflag [#allocation5], %s1270
        %s1272 = sand.u32 %s451, 1
        %s1273 = smul.addr %s1272, 8
        %s1274 = scalar_lea.vmem [#allocation4], %s1273
        // Predicated region
        $region93: #{self_mha_decoder_forward.1} parent=83 // pred_check
          %p1275 = pneg %p461
        $region94: #{self_mha_decoder_forward.1} parent=83 // pred_check_branch
          %1277 = sbr.rel (%p1275) target = $region96
        $region95: #{self_mha_decoder_forward.1} parent=83 // pred_region
          %1279 = vsyncadd %s1271, 0
          %s1280 = smul.addr %s34, 8
          %s1281 = scalar_lea.hbm %s16, %s1280
          %s1283 = sshll.u32 %s1274, 4
          %s1284 = int_to_ptr.vmem [resolvable:$true] %s1283
          %s1285 = sshll.u32 %s1281, 4
          %s1286 = int_to_ptr.hbm [resolvable:$true] %s1285
          %1288 = dma.vmem_to_hbm [thread:$0]  %s1284, 128, %s1286, %s1271
        $region96: #{self_mha_decoder_forward.1} parent=83 // pred_fallthru
          _
      $region84: #{self_mha_decoder_forward.1} parent=5 // pred_fallthru
        _
      %p1289 = scmp.le.s32.totalorder 2, %s25
      // Predicated region
      $region97: #{self_mha_decoder_forward.1} parent=5 // pred_check
        %p1290 = pneg %p1289
      $region98: #{self_mha_decoder_forward.1} parent=5 // pred_check_branch
        %1292 = sbr.rel (%p1290) target = $region100
      $region99: #{self_mha_decoder_forward.1} parent=5 // pred_region
        %s1293 = ssub.s32 %s25, 2
        // Predicated region
        $region101: #{self_mha_decoder_forward.1} parent=99 // pred_check
          %p1294 = pneg %p467
        $region102: #{self_mha_decoder_forward.1} parent=99 // pred_check_branch
          %1296 = sbr.rel (%p1294) target = $region104
        $region103: #{self_mha_decoder_forward.1} parent=99 // pred_region
          %s1297 = sand.u32 %s452, 1
          %s1298 = scalar_lea.sflag [#allocation5], %s1297
          %s1299 = sand.u32 %s452, 1
          %s1300 = smul.addr %s1299, 8
          %s1301 = scalar_lea.vmem [#allocation4], %s1300
          %1303 = dma.done %s1298, 128
        $region104: #{self_mha_decoder_forward.1} parent=99 // pred_fallthru
          _
      $region100: #{self_mha_decoder_forward.1} parent=5 // pred_fallthru
        _
    $region6: #{self_mha_decoder_forward.1} parent=1 // loop_footer
      %s29 = sadd.s32 1, %s25
    $region7: #{self_mha_decoder_forward.1} parent=1 // loop_footer_branch
      %24 = sbr.rel target = $region3
    $region8: #{self_mha_decoder_forward.1} parent=1 // loop_exit
      _
    %1304 = vsyncpa [#allocation5], 1
    %s1305 = scalar_lea.sflag [#allocation5], 1
    %1306 = vsyncpa %s1305, 1

</llo_original>
